<compile_context>
chip_gen: v7x
topology: tpu7x:2x2x1
jax: 0.10.0
libtpu: 0.0.40
codegen_flags: <defaults>
</compile_context>

<pallas_src>
import functools

import jax
import jax.numpy as jnp
from jax.experimental import pallas as pl
from jax.experimental.pallas import tpu as pltpu


def _ceil_to(x, m):
    return ((x + m - 1) // m) * m


# ----------------------------- Pallas kernel ------------------------------
def _rnn_kernel(ids_ref, emb_ref, wih_ref, whh_ref, b_ref, wlin_ref, blin_ref,
                o_ref, x_scratch, *, seq_len, batch, b_pad):
    """Whole forward (embedding gather + RNN recurrence + Linear), no grid.

    ids_ref   : SMEM (batch*seq_len,) int32 token ids, layout b*seq_len + t
    emb_ref   : VMEM (V_pad, E_pad)  padded embedding table
    wih_ref   : VMEM (E_pad, H_pad)  W_ih^T (zero padded)
    whh_ref   : VMEM (H_pad, H_pad)  W_hh^T (zero padded)
    b_ref     : VMEM (1, H_pad)      b_ih + b_hh
    wlin_ref  : VMEM (H_pad, O_pad)  W_lin^T
    blin_ref  : VMEM (1, O_pad)      b_lin
    o_ref     : VMEM (b_pad, O_pad)
    x_scratch : VMEM (seq_len*b_pad, E_pad) time-major gathered embeddings
    """
    h_pad = whh_ref.shape[1]

    # Fused embedding gather: zero the scratch (padded batch rows stay 0),
    # then 16 dynamic row reads from the VMEM table into time-major rows.
    x_scratch[...] = jnp.zeros_like(x_scratch)
    for t in range(seq_len):
        for b in range(batch):
            tok = ids_ref[b * seq_len + t]                     # SMEM scalar
            x_scratch[pl.ds(t * b_pad + b, 1), :] = emb_ref[pl.ds(tok, 1), :]

    # Input projection hoisted out of the recurrence; bias folded in.
    xp = (jnp.dot(x_scratch[...], wih_ref[...],
                  preferred_element_type=jnp.float32)
          + b_ref[...])                                        # (S*B_pad, H_pad)

    # Recurrence: hidden state carried in vregs, fully unrolled (S small,
    # static) so every slice is static and sublane aligned.
    h = jnp.zeros((b_pad, h_pad), jnp.float32)                 # torch h0 = 0
    for t in range(seq_len):
        x_t = xp[t * b_pad:(t + 1) * b_pad, :]                 # (b_pad, H_pad)
        h = jnp.tanh(x_t + jnp.dot(h, whh_ref[...],
                                   preferred_element_type=jnp.float32))

    # Final Linear on the last hidden state (lane-dense unmasked store).
    o_ref[...] = (jnp.dot(h, wlin_ref[...], preferred_element_type=jnp.float32)
                  + blin_ref[...]).astype(o_ref.dtype)


# ----------------------------- wrapper / param prep -----------------------
def make_rnn_forward(params):
    """Pads/transposes parameters once and returns a jitted forward(x_ids)."""
    emb, w_ih, w_hh, b_ih, b_hh, w_lin, b_lin = (
        params["emb"], params["w_ih"], params["w_hh"],
        params["b_ih"], params["b_hh"], params["w_lin"], params["b_lin"])

    V, E = emb.shape
    H = w_ih.shape[0]
    O = w_lin.shape[0]

    V_pad = _ceil_to(V, 8)
    E_pad = _ceil_to(E, 128)
    H_pad = _ceil_to(H, 128)
    O_pad = _ceil_to(O, 128)

    # One-time parameter layout prep (not repeated per call).
    emb_p = jnp.pad(emb.astype(jnp.float32),
                    ((0, V_pad - V), (0, E_pad - E)))           # (V_pad, E_pad)
    wih_p = jnp.pad(w_ih.T.astype(jnp.float32),
                    ((0, E_pad - E), (0, H_pad - H)))           # (E_pad, H_pad)
    whh_p = jnp.pad(w_hh.T.astype(jnp.float32),
                    ((0, H_pad - H), (0, H_pad - H)))           # (H_pad, H_pad)
    bias_p = jnp.pad((b_ih + b_hh).astype(jnp.float32),
                     (0, H_pad - H)).reshape(1, H_pad)
    wlin_p = jnp.pad(w_lin.T.astype(jnp.float32),
                     ((0, H_pad - H), (0, O_pad - O)))          # (H_pad, O_pad)
    blin_p = jnp.pad(b_lin.astype(jnp.float32),
                     (0, O_pad - O)).reshape(1, O_pad)

    def forward(x_ids):                                         # (B, S) int
        B, S = x_ids.shape
        B_pad = _ceil_to(B, 8)
        ids_flat = x_ids.reshape(-1).astype(jnp.int32)          # (B*S,)

        kernel = functools.partial(_rnn_kernel, seq_len=S, batch=B, b_pad=B_pad)
        vmem = pl.BlockSpec(memory_space=pltpu.MemorySpace.VMEM)
        smem = pl.BlockSpec(memory_space=pltpu.MemorySpace.SMEM)

        out = pl.pallas_call(
            kernel,
            out_shape=jax.ShapeDtypeStruct((B_pad, O_pad), jnp.float32),
            in_specs=[smem, vmem, vmem, vmem, vmem, vmem, vmem],
            out_specs=vmem,
            scratch_shapes=[pltpu.VMEM((S * B_pad, E_pad), jnp.float32)],
        )(ids_flat, emb_p, wih_p, whh_p, bias_p, wlin_p, blin_p)
        return out[:B, :O]

    return jax.jit(forward)


# ----------------------------- pure-JAX reference -------------------------
def rnn_forward_ref(x_ids, params):
    emb, w_ih, w_hh, b_ih, b_hh, w_lin, b_lin = (
        params["emb"], params["w_ih"], params["w_hh"],
        params["b_ih"], params["b_hh"], params["w_lin"], params["b_lin"])
    x_emb = jnp.take(emb, x_ids, axis=0)          # (B, S, E)
    B, S, _ = x_emb.shape
    H = w_ih.shape[0]
    h = jnp.zeros((B, H), jnp.float32)
    for t in range(S):
        h = jnp.tanh(x_emb[:, t, :] @ w_ih.T + b_ih + h @ w_hh.T + b_hh)
    return h @ w_lin.T + b_lin


# ----------------------------------------------------------------------------
if __name__ == "__main__":
    # Module-implied sizes: len(vocab)=100 -> 101 embedding rows, emb dim 300,
    # hidden 50, num classes 4.  Batch=2, seq=8.
    VOCAB = 100
    E, H, O = 300, 50, 4
    B, S = 2, 8

    key = jax.random.PRNGKey(0)
    k_emb, k_wih, k_whh, k_bih, k_bhh, k_wl, k_bl, k_x = jax.random.split(key, 8)
    scale_rnn = 1.0 / jnp.sqrt(H)
    scale_lin = 1.0 / jnp.sqrt(H)
    params = {
        "emb":   jax.random.normal(k_emb, (VOCAB + 1, E), jnp.float32),
        "w_ih":  jax.random.uniform(k_wih, (H, E), jnp.float32, -scale_rnn, scale_rnn),
        "w_hh":  jax.random.uniform(k_whh, (H, H), jnp.float32, -scale_rnn, scale_rnn),
        "b_ih":  jax.random.uniform(k_bih, (H,),   jnp.float32, -scale_rnn, scale_rnn),
        "b_hh":  jax.random.uniform(k_bhh, (H,),   jnp.float32, -scale_rnn, scale_rnn),
        "w_lin": jax.random.uniform(k_wl,  (O, H), jnp.float32, -scale_lin, scale_lin),
        "b_lin": jax.random.uniform(k_bl,  (O,),   jnp.float32, -scale_lin, scale_lin),
    }
    x_ids = jax.random.randint(k_x, (B, S), 0, VOCAB + 1, dtype=jnp.int32)

    rnn_forward = make_rnn_forward(params)            # one-time param prep
    y = jax.block_until_ready(rnn_forward(x_ids))
    y_ref = jax.block_until_ready(rnn_forward_ref(x_ids, params))

    assert y.shape == (B, O)
    assert jnp.allclose(y, y_ref, atol=1e-4, rtol=1e-4), (y, y_ref)
    print("KERNEL_OK")
</pallas_src>

<mosaic_0001>
module attributes {stable_mosaic.version = 11 : i64} {
  func.func @_rnn_kernel(%arg0: memref<16xi32, #tpu.memory_space<smem>>, %arg1: memref<104x384xf32, #tpu.memory_space<vmem>>, %arg2: memref<384x128xf32, #tpu.memory_space<vmem>>, %arg3: memref<128x128xf32, #tpu.memory_space<vmem>>, %arg4: memref<1x128xf32, #tpu.memory_space<vmem>>, %arg5: memref<128x128xf32, #tpu.memory_space<vmem>>, %arg6: memref<1x128xf32, #tpu.memory_space<vmem>>, %arg7: memref<8x128xf32, #tpu.memory_space<vmem>>, %arg8: memref<64x384xf32, #tpu.memory_space<vmem>>) attributes {dimension_semantics = [], scalar_prefetch = 0 : i64, scratch_operands = 1 : i64, tpu.core_type = #tpu.core_type<tc>} {
    %cst = arith.constant 0.000000e+00 : f32
    %0 = vector.broadcast %cst : f32 to vector<64x384xf32>
    %c0 = arith.constant 0 : index
    %c0_0 = arith.constant 0 : index
    %1 = vector.load %arg8[%c0, %c0_0] : memref<64x384xf32, #tpu.memory_space<vmem>>, vector<64x384xf32>
    tpu.vector_store %arg8[%c0, %c0_0], %0 {strides = array<i32>} : memref<64x384xf32, #tpu.memory_space<vmem>>, vector<64x384xf32>,
    %c0_1 = arith.constant 0 : index
    %2 = memref.load %arg0[%c0_1] : memref<16xi32, #tpu.memory_space<smem>>
    %3 = arith.index_cast %2 : i32 to index
    %c0_2 = arith.constant 0 : index
    %4 = vector.load %arg1[%3, %c0_2] : memref<104x384xf32, #tpu.memory_space<vmem>>, vector<1x384xf32>
    %c0_3 = arith.constant 0 : index
    %c0_4 = arith.constant 0 : index
    %5 = vector.load %arg8[%c0_3, %c0_4] : memref<64x384xf32, #tpu.memory_space<vmem>>, vector<1x384xf32>
    tpu.vector_store %arg8[%c0_3, %c0_4], %4 {strides = array<i32>} : memref<64x384xf32, #tpu.memory_space<vmem>>, vector<1x384xf32>,
    %c8 = arith.constant 8 : index
    %6 = memref.load %arg0[%c8] : memref<16xi32, #tpu.memory_space<smem>>
    %7 = arith.index_cast %6 : i32 to index
    %c0_5 = arith.constant 0 : index
    %8 = vector.load %arg1[%7, %c0_5] : memref<104x384xf32, #tpu.memory_space<vmem>>, vector<1x384xf32>
    %c1 = arith.constant 1 : index
    %c0_6 = arith.constant 0 : index
    %9 = vector.load %arg8[%c1, %c0_6] : memref<64x384xf32, #tpu.memory_space<vmem>>, vector<1x384xf32>
    tpu.vector_store %arg8[%c1, %c0_6], %8 {strides = array<i32>} : memref<64x384xf32, #tpu.memory_space<vmem>>, vector<1x384xf32>,
    %c1_7 = arith.constant 1 : index
    %10 = memref.load %arg0[%c1_7] : memref<16xi32, #tpu.memory_space<smem>>
    %11 = arith.index_cast %10 : i32 to index
    %c0_8 = arith.constant 0 : index
    %12 = vector.load %arg1[%11, %c0_8] : memref<104x384xf32, #tpu.memory_space<vmem>>, vector<1x384xf32>
    %c8_9 = arith.constant 8 : index
    %c0_10 = arith.constant 0 : index
    %13 = vector.load %arg8[%c8_9, %c0_10] : memref<64x384xf32, #tpu.memory_space<vmem>>, vector<1x384xf32>
    tpu.vector_store %arg8[%c8_9, %c0_10], %12 {strides = array<i32>} : memref<64x384xf32, #tpu.memory_space<vmem>>, vector<1x384xf32>,
    %c9 = arith.constant 9 : index
    %14 = memref.load %arg0[%c9] : memref<16xi32, #tpu.memory_space<smem>>
    %15 = arith.index_cast %14 : i32 to index
    %c0_11 = arith.constant 0 : index
    %16 = vector.load %arg1[%15, %c0_11] : memref<104x384xf32, #tpu.memory_space<vmem>>, vector<1x384xf32>
    %c9_12 = arith.constant 9 : index
    %c0_13 = arith.constant 0 : index
    %17 = vector.load %arg8[%c9_12, %c0_13] : memref<64x384xf32, #tpu.memory_space<vmem>>, vector<1x384xf32>
    tpu.vector_store %arg8[%c9_12, %c0_13], %16 {strides = array<i32>} : memref<64x384xf32, #tpu.memory_space<vmem>>, vector<1x384xf32>,
    %c2 = arith.constant 2 : index
    %18 = memref.load %arg0[%c2] : memref<16xi32, #tpu.memory_space<smem>>
    %19 = arith.index_cast %18 : i32 to index
    %c0_14 = arith.constant 0 : index
    %20 = vector.load %arg1[%19, %c0_14] : memref<104x384xf32, #tpu.memory_space<vmem>>, vector<1x384xf32>
    %c16 = arith.constant 16 : index
    %c0_15 = arith.constant 0 : index
    %21 = vector.load %arg8[%c16, %c0_15] : memref<64x384xf32, #tpu.memory_space<vmem>>, vector<1x384xf32>
    tpu.vector_store %arg8[%c16, %c0_15], %20 {strides = array<i32>} : memref<64x384xf32, #tpu.memory_space<vmem>>, vector<1x384xf32>,
    %c10 = arith.constant 10 : index
    %22 = memref.load %arg0[%c10] : memref<16xi32, #tpu.memory_space<smem>>
    %23 = arith.index_cast %22 : i32 to index
    %c0_16 = arith.constant 0 : index
    %24 = vector.load %arg1[%23, %c0_16] : memref<104x384xf32, #tpu.memory_space<vmem>>, vector<1x384xf32>
    %c17 = arith.constant 17 : index
    %c0_17 = arith.constant 0 : index
    %25 = vector.load %arg8[%c17, %c0_17] : memref<64x384xf32, #tpu.memory_space<vmem>>, vector<1x384xf32>
    tpu.vector_store %arg8[%c17, %c0_17], %24 {strides = array<i32>} : memref<64x384xf32, #tpu.memory_space<vmem>>, vector<1x384xf32>,
    %c3 = arith.constant 3 : index
    %26 = memref.load %arg0[%c3] : memref<16xi32, #tpu.memory_space<smem>>
    %27 = arith.index_cast %26 : i32 to index
    %c0_18 = arith.constant 0 : index
    %28 = vector.load %arg1[%27, %c0_18] : memref<104x384xf32, #tpu.memory_space<vmem>>, vector<1x384xf32>
    %c24 = arith.constant 24 : index
    %c0_19 = arith.constant 0 : index
    %29 = vector.load %arg8[%c24, %c0_19] : memref<64x384xf32, #tpu.memory_space<vmem>>, vector<1x384xf32>
    tpu.vector_store %arg8[%c24, %c0_19], %28 {strides = array<i32>} : memref<64x384xf32, #tpu.memory_space<vmem>>, vector<1x384xf32>,
    %c11 = arith.constant 11 : index
    %30 = memref.load %arg0[%c11] : memref<16xi32, #tpu.memory_space<smem>>
    %31 = arith.index_cast %30 : i32 to index
    %c0_20 = arith.constant 0 : index
    %32 = vector.load %arg1[%31, %c0_20] : memref<104x384xf32, #tpu.memory_space<vmem>>, vector<1x384xf32>
    %c25 = arith.constant 25 : index
    %c0_21 = arith.constant 0 : index
    %33 = vector.load %arg8[%c25, %c0_21] : memref<64x384xf32, #tpu.memory_space<vmem>>, vector<1x384xf32>
    tpu.vector_store %arg8[%c25, %c0_21], %32 {strides = array<i32>} : memref<64x384xf32, #tpu.memory_space<vmem>>, vector<1x384xf32>,
    %c4 = arith.constant 4 : index
    %34 = memref.load %arg0[%c4] : memref<16xi32, #tpu.memory_space<smem>>
    %35 = arith.index_cast %34 : i32 to index
    %c0_22 = arith.constant 0 : index
    %36 = vector.load %arg1[%35, %c0_22] : memref<104x384xf32, #tpu.memory_space<vmem>>, vector<1x384xf32>
    %c32 = arith.constant 32 : index
    %c0_23 = arith.constant 0 : index
    %37 = vector.load %arg8[%c32, %c0_23] : memref<64x384xf32, #tpu.memory_space<vmem>>, vector<1x384xf32>
    tpu.vector_store %arg8[%c32, %c0_23], %36 {strides = array<i32>} : memref<64x384xf32, #tpu.memory_space<vmem>>, vector<1x384xf32>,
    %c12 = arith.constant 12 : index
    %38 = memref.load %arg0[%c12] : memref<16xi32, #tpu.memory_space<smem>>
    %39 = arith.index_cast %38 : i32 to index
    %c0_24 = arith.constant 0 : index
    %40 = vector.load %arg1[%39, %c0_24] : memref<104x384xf32, #tpu.memory_space<vmem>>, vector<1x384xf32>
    %c33 = arith.constant 33 : index
    %c0_25 = arith.constant 0 : index
    %41 = vector.load %arg8[%c33, %c0_25] : memref<64x384xf32, #tpu.memory_space<vmem>>, vector<1x384xf32>
    tpu.vector_store %arg8[%c33, %c0_25], %40 {strides = array<i32>} : memref<64x384xf32, #tpu.memory_space<vmem>>, vector<1x384xf32>,
    %c5 = arith.constant 5 : index
    %42 = memref.load %arg0[%c5] : memref<16xi32, #tpu.memory_space<smem>>
    %43 = arith.index_cast %42 : i32 to index
    %c0_26 = arith.constant 0 : index
    %44 = vector.load %arg1[%43, %c0_26] : memref<104x384xf32, #tpu.memory_space<vmem>>, vector<1x384xf32>
    %c40 = arith.constant 40 : index
    %c0_27 = arith.constant 0 : index
    %45 = vector.load %arg8[%c40, %c0_27] : memref<64x384xf32, #tpu.memory_space<vmem>>, vector<1x384xf32>
    tpu.vector_store %arg8[%c40, %c0_27], %44 {strides = array<i32>} : memref<64x384xf32, #tpu.memory_space<vmem>>, vector<1x384xf32>,
    %c13 = arith.constant 13 : index
    %46 = memref.load %arg0[%c13] : memref<16xi32, #tpu.memory_space<smem>>
    %47 = arith.index_cast %46 : i32 to index
    %c0_28 = arith.constant 0 : index
    %48 = vector.load %arg1[%47, %c0_28] : memref<104x384xf32, #tpu.memory_space<vmem>>, vector<1x384xf32>
    %c41 = arith.constant 41 : index
    %c0_29 = arith.constant 0 : index
    %49 = vector.load %arg8[%c41, %c0_29] : memref<64x384xf32, #tpu.memory_space<vmem>>, vector<1x384xf32>
    tpu.vector_store %arg8[%c41, %c0_29], %48 {strides = array<i32>} : memref<64x384xf32, #tpu.memory_space<vmem>>, vector<1x384xf32>,
    %c6 = arith.constant 6 : index
    %50 = memref.load %arg0[%c6] : memref<16xi32, #tpu.memory_space<smem>>
    %51 = arith.index_cast %50 : i32 to index
    %c0_30 = arith.constant 0 : index
    %52 = vector.load %arg1[%51, %c0_30] : memref<104x384xf32, #tpu.memory_space<vmem>>, vector<1x384xf32>
    %c48 = arith.constant 48 : index
    %c0_31 = arith.constant 0 : index
    %53 = vector.load %arg8[%c48, %c0_31] : memref<64x384xf32, #tpu.memory_space<vmem>>, vector<1x384xf32>
    tpu.vector_store %arg8[%c48, %c0_31], %52 {strides = array<i32>} : memref<64x384xf32, #tpu.memory_space<vmem>>, vector<1x384xf32>,
    %c14 = arith.constant 14 : index
    %54 = memref.load %arg0[%c14] : memref<16xi32, #tpu.memory_space<smem>>
    %55 = arith.index_cast %54 : i32 to index
    %c0_32 = arith.constant 0 : index
    %56 = vector.load %arg1[%55, %c0_32] : memref<104x384xf32, #tpu.memory_space<vmem>>, vector<1x384xf32>
    %c49 = arith.constant 49 : index
    %c0_33 = arith.constant 0 : index
    %57 = vector.load %arg8[%c49, %c0_33] : memref<64x384xf32, #tpu.memory_space<vmem>>, vector<1x384xf32>
    tpu.vector_store %arg8[%c49, %c0_33], %56 {strides = array<i32>} : memref<64x384xf32, #tpu.memory_space<vmem>>, vector<1x384xf32>,
    %c7 = arith.constant 7 : index
    %58 = memref.load %arg0[%c7] : memref<16xi32, #tpu.memory_space<smem>>
    %59 = arith.index_cast %58 : i32 to index
    %c0_34 = arith.constant 0 : index
    %60 = vector.load %arg1[%59, %c0_34] : memref<104x384xf32, #tpu.memory_space<vmem>>, vector<1x384xf32>
    %c56 = arith.constant 56 : index
    %c0_35 = arith.constant 0 : index
    %61 = vector.load %arg8[%c56, %c0_35] : memref<64x384xf32, #tpu.memory_space<vmem>>, vector<1x384xf32>
    tpu.vector_store %arg8[%c56, %c0_35], %60 {strides = array<i32>} : memref<64x384xf32, #tpu.memory_space<vmem>>, vector<1x384xf32>,
    %c15 = arith.constant 15 : index
    %62 = memref.load %arg0[%c15] : memref<16xi32, #tpu.memory_space<smem>>
    %63 = arith.index_cast %62 : i32 to index
    %c0_36 = arith.constant 0 : index
    %64 = vector.load %arg1[%63, %c0_36] : memref<104x384xf32, #tpu.memory_space<vmem>>, vector<1x384xf32>
    %c57 = arith.constant 57 : index
    %c0_37 = arith.constant 0 : index
    %65 = vector.load %arg8[%c57, %c0_37] : memref<64x384xf32, #tpu.memory_space<vmem>>, vector<1x384xf32>
    tpu.vector_store %arg8[%c57, %c0_37], %64 {strides = array<i32>} : memref<64x384xf32, #tpu.memory_space<vmem>>, vector<1x384xf32>,
    %c0_38 = arith.constant 0 : index
    %c0_39 = arith.constant 0 : index
    %66 = vector.load %arg8[%c0_38, %c0_39] : memref<64x384xf32, #tpu.memory_space<vmem>>, vector<64x384xf32>
    %c0_40 = arith.constant 0 : index
    %c0_41 = arith.constant 0 : index
    %67 = vector.load %arg2[%c0_40, %c0_41] : memref<384x128xf32, #tpu.memory_space<vmem>>, vector<384x128xf32>
    %cst_42 = arith.constant dense<0.000000e+00> : vector<64x128xf32>
    %68 = tpu.matmul %66, %67, %cst_42 {dimension_numbers = #tpu.dot_dimension_numbers<[1], [0], [0], [1], [0, 0, 1, 1], [], []>} : vector<64x384xf32>, vector<384x128xf32>, vector<64x128xf32> -> vector<64x128xf32>
    %c0_43 = arith.constant 0 : index
    %c0_44 = arith.constant 0 : index
    %69 = vector.load %arg4[%c0_43, %c0_44] : memref<1x128xf32, #tpu.memory_space<vmem>>, vector<1x128xf32>
    %70 = vector.broadcast %69 : vector<1x128xf32> to vector<64x128xf32>
    %71 = arith.addf %68, %70 : vector<64x128xf32>
    %cst_45 = arith.constant 0.000000e+00 : f32
    %72 = vector.broadcast %cst_45 : f32 to vector<8x128xf32>
    %73 = vector.extract_strided_slice %71 {offsets = [0, 0], sizes = [8, 128], strides = [1, 1]} : vector<64x128xf32> to vector<8x128xf32>
    %c0_46 = arith.constant 0 : index
    %c0_47 = arith.constant 0 : index
    %74 = vector.load %arg3[%c0_46, %c0_47] : memref<128x128xf32, #tpu.memory_space<vmem>>, vector<128x128xf32>
    %cst_48 = arith.constant dense<0.000000e+00> : vector<8x128xf32>
    %75 = tpu.matmul %72, %74, %cst_48 {dimension_numbers = #tpu.dot_dimension_numbers<[1], [0], [0], [1], [0, 0, 1, 1], [], []>} : vector<8x128xf32>, vector<128x128xf32>, vector<8x128xf32> -> vector<8x128xf32>
    %76 = arith.addf %73, %75 : vector<8x128xf32>
    %77 = math.tanh %76 : vector<8x128xf32>
    %78 = vector.extract_strided_slice %71 {offsets = [8, 0], sizes = [8, 128], strides = [1, 1]} : vector<64x128xf32> to vector<8x128xf32>
    %c0_49 = arith.constant 0 : index
    %c0_50 = arith.constant 0 : index
    %79 = vector.load %arg3[%c0_49, %c0_50] : memref<128x128xf32, #tpu.memory_space<vmem>>, vector<128x128xf32>
    %cst_51 = arith.constant dense<0.000000e+00> : vector<8x128xf32>
    %80 = tpu.matmul %77, %79, %cst_51 {dimension_numbers = #tpu.dot_dimension_numbers<[1], [0], [0], [1], [0, 0, 1, 1], [], []>} : vector<8x128xf32>, vector<128x128xf32>, vector<8x128xf32> -> vector<8x128xf32>
    %81 = arith.addf %78, %80 : vector<8x128xf32>
    %82 = math.tanh %81 : vector<8x128xf32>
    %83 = vector.extract_strided_slice %71 {offsets = [16, 0], sizes = [8, 128], strides = [1, 1]} : vector<64x128xf32> to vector<8x128xf32>
    %c0_52 = arith.constant 0 : index
    %c0_53 = arith.constant 0 : index
    %84 = vector.load %arg3[%c0_52, %c0_53] : memref<128x128xf32, #tpu.memory_space<vmem>>, vector<128x128xf32>
    %cst_54 = arith.constant dense<0.000000e+00> : vector<8x128xf32>
    %85 = tpu.matmul %82, %84, %cst_54 {dimension_numbers = #tpu.dot_dimension_numbers<[1], [0], [0], [1], [0, 0, 1, 1], [], []>} : vector<8x128xf32>, vector<128x128xf32>, vector<8x128xf32> -> vector<8x128xf32>
    %86 = arith.addf %83, %85 : vector<8x128xf32>
    %87 = math.tanh %86 : vector<8x128xf32>
    %88 = vector.extract_strided_slice %71 {offsets = [24, 0], sizes = [8, 128], strides = [1, 1]} : vector<64x128xf32> to vector<8x128xf32>
    %c0_55 = arith.constant 0 : index
    %c0_56 = arith.constant 0 : index
    %89 = vector.load %arg3[%c0_55, %c0_56] : memref<128x128xf32, #tpu.memory_space<vmem>>, vector<128x128xf32>
    %cst_57 = arith.constant dense<0.000000e+00> : vector<8x128xf32>
    %90 = tpu.matmul %87, %89, %cst_57 {dimension_numbers = #tpu.dot_dimension_numbers<[1], [0], [0], [1], [0, 0, 1, 1], [], []>} : vector<8x128xf32>, vector<128x128xf32>, vector<8x128xf32> -> vector<8x128xf32>
    %91 = arith.addf %88, %90 : vector<8x128xf32>
    %92 = math.tanh %91 : vector<8x128xf32>
    %93 = vector.extract_strided_slice %71 {offsets = [32, 0], sizes = [8, 128], strides = [1, 1]} : vector<64x128xf32> to vector<8x128xf32>
    %c0_58 = arith.constant 0 : index
    %c0_59 = arith.constant 0 : index
    %94 = vector.load %arg3[%c0_58, %c0_59] : memref<128x128xf32, #tpu.memory_space<vmem>>, vector<128x128xf32>
    %cst_60 = arith.constant dense<0.000000e+00> : vector<8x128xf32>
    %95 = tpu.matmul %92, %94, %cst_60 {dimension_numbers = #tpu.dot_dimension_numbers<[1], [0], [0], [1], [0, 0, 1, 1], [], []>} : vector<8x128xf32>, vector<128x128xf32>, vector<8x128xf32> -> vector<8x128xf32>
    %96 = arith.addf %93, %95 : vector<8x128xf32>
    %97 = math.tanh %96 : vector<8x128xf32>
    %98 = vector.extract_strided_slice %71 {offsets = [40, 0], sizes = [8, 128], strides = [1, 1]} : vector<64x128xf32> to vector<8x128xf32>
    %c0_61 = arith.constant 0 : index
    %c0_62 = arith.constant 0 : index
    %99 = vector.load %arg3[%c0_61, %c0_62] : memref<128x128xf32, #tpu.memory_space<vmem>>, vector<128x128xf32>
    %cst_63 = arith.constant dense<0.000000e+00> : vector<8x128xf32>
    %100 = tpu.matmul %97, %99, %cst_63 {dimension_numbers = #tpu.dot_dimension_numbers<[1], [0], [0], [1], [0, 0, 1, 1], [], []>} : vector<8x128xf32>, vector<128x128xf32>, vector<8x128xf32> -> vector<8x128xf32>
    %101 = arith.addf %98, %100 : vector<8x128xf32>
    %102 = math.tanh %101 : vector<8x128xf32>
    %103 = vector.extract_strided_slice %71 {offsets = [48, 0], sizes = [8, 128], strides = [1, 1]} : vector<64x128xf32> to vector<8x128xf32>
    %c0_64 = arith.constant 0 : index
    %c0_65 = arith.constant 0 : index
    %104 = vector.load %arg3[%c0_64, %c0_65] : memref<128x128xf32, #tpu.memory_space<vmem>>, vector<128x128xf32>
    %cst_66 = arith.constant dense<0.000000e+00> : vector<8x128xf32>
    %105 = tpu.matmul %102, %104, %cst_66 {dimension_numbers = #tpu.dot_dimension_numbers<[1], [0], [0], [1], [0, 0, 1, 1], [], []>} : vector<8x128xf32>, vector<128x128xf32>, vector<8x128xf32> -> vector<8x128xf32>
    %106 = arith.addf %103, %105 : vector<8x128xf32>
    %107 = math.tanh %106 : vector<8x128xf32>
    %108 = vector.extract_strided_slice %71 {offsets = [56, 0], sizes = [8, 128], strides = [1, 1]} : vector<64x128xf32> to vector<8x128xf32>
    %c0_67 = arith.constant 0 : index
    %c0_68 = arith.constant 0 : index
    %109 = vector.load %arg3[%c0_67, %c0_68] : memref<128x128xf32, #tpu.memory_space<vmem>>, vector<128x128xf32>
    %cst_69 = arith.constant dense<0.000000e+00> : vector<8x128xf32>
    %110 = tpu.matmul %107, %109, %cst_69 {dimension_numbers = #tpu.dot_dimension_numbers<[1], [0], [0], [1], [0, 0, 1, 1], [], []>} : vector<8x128xf32>, vector<128x128xf32>, vector<8x128xf32> -> vector<8x128xf32>
    %111 = arith.addf %108, %110 : vector<8x128xf32>
    %112 = math.tanh %111 : vector<8x128xf32>
    %c0_70 = arith.constant 0 : index
    %c0_71 = arith.constant 0 : index
    %113 = vector.load %arg5[%c0_70, %c0_71] : memref<128x128xf32, #tpu.memory_space<vmem>>, vector<128x128xf32>
    %cst_72 = arith.constant dense<0.000000e+00> : vector<8x128xf32>
    %114 = tpu.matmul %112, %113, %cst_72 {dimension_numbers = #tpu.dot_dimension_numbers<[1], [0], [0], [1], [0, 0, 1, 1], [], []>} : vector<8x128xf32>, vector<128x128xf32>, vector<8x128xf32> -> vector<8x128xf32>
    %c0_73 = arith.constant 0 : index
    %c0_74 = arith.constant 0 : index
    %115 = vector.load %arg6[%c0_73, %c0_74] : memref<1x128xf32, #tpu.memory_space<vmem>>, vector<1x128xf32>
    %116 = vector.broadcast %115 : vector<1x128xf32> to vector<8x128xf32>
    %117 = arith.addf %114, %116 : vector<8x128xf32>
    %c0_75 = arith.constant 0 : index
    %c0_76 = arith.constant 0 : index
    %118 = vector.load %arg7[%c0_75, %c0_76] : memref<8x128xf32, #tpu.memory_space<vmem>>, vector<8x128xf32>
    tpu.vector_store %arg7[%c0_75, %c0_76], %117 {strides = array<i32>} : memref<8x128xf32, #tpu.memory_space<vmem>>, vector<8x128xf32>,
    return
  }
}

</mosaic_0001>

<llo_original>
// kernel: forward.1
$region0: #{forward.1}
  #allocation0 [shape = 'u32[]', space=smem, size = 0x4, offset = 0x4, fixed_abs, tag = 'smem constant byte address 0x4 - core index']
  #allocation1 [shape = 'u32[144,128]{1,0:T(1,128)}', space=vmem, size = 0x12000, scoped, tag = 'internal scratch']
  #allocation2 [shape = 'f32[64,384]{1,0:T(8,128)}', space=vmem, size = 0x18000, scoped, tag = 'scratch operand']
  %s0 = inlined_call_operand.vmem [shape: s32[16], index: 0, kind: input, shape index: {}]
  %s1 = inlined_call_operand.hbm [shape: f32[104,384], index: 1, kind: input, shape index: {}]
  %s2 = inlined_call_operand.hbm [shape: f32[384,128], index: 2, kind: input, shape index: {}]
  %s3 = inlined_call_operand.hbm [shape: f32[128,128], index: 3, kind: input, shape index: {}]
  %s4 = inlined_call_operand.vmem [shape: f32[1,128], index: 4, kind: input, shape index: {}]
  %s5 = inlined_call_operand.hbm [shape: f32[128,128], index: 5, kind: input, shape index: {}]
  %s6 = inlined_call_operand.vmem [shape: f32[1,128], index: 6, kind: input, shape index: {}]
  %s7 = inlined_call_operand.vmem [shape: f32[8,128], index: 7, kind: output, shape index: {}]
  %s8 = sld [smem:[#allocation0]]
  $region58: #{forward.1} parent=0
    _
  %s10 = ssub.s32 1, %s8
  %s11 = scalar_select 0, %s10, %s8
  $region1: #{forward.1} parent=0
    #allocation3 [shape = 'u8[512]{0}', space=smem, size = 0x200, scoped, tag = 'input window, operand 0, single buffered']
    #allocation4 [shape = 's32[1]{0}', space=sflag, size = 0x4, scoped, tag = 'scoped memory for forward.1']
    #allocation5 [shape = 's32[1]{0}', space=sflag, size = 0x4, scoped, tag = 'scoped memory for forward.1']
    #allocation6 [shape = 'u8[159744]{0}', space=vmem, size = 0x27000, scoped, tag = 'input window, operand 1, single buffered']
    #allocation7 [shape = 'u8[196608]{0}', space=vmem, size = 0x30000, scoped, tag = 'input window, operand 2, single buffered']
    #allocation8 [shape = 's32[1]{0}', space=sflag, size = 0x4, scoped, tag = 'scoped memory for forward.1']
    #allocation9 [shape = 'u8[65536]{0}', space=vmem, size = 0x10000, scoped, tag = 'input window, operand 3, single buffered']
    #allocation10 [shape = 'u8[65536]{0}', space=vmem, size = 0x10000, scoped, tag = 'input window, operand 5, single buffered']
    #allocation11 [shape = 's32[1]{0}', space=sflag, size = 0x4, scoped, tag = 'scoped memory for forward.1']
    %12 = vsyncpa [#allocation5], 0
    %13 = vsyncpa [#allocation4], 0
    %14 = vsyncpa [#allocation8], 0
    %15 = vsyncpa [#allocation11], 0
    // Predicated region
    $region2: #{forward.1} parent=1 // pred_check
      _
    $region3: #{forward.1} parent=1 // pred_check_branch
      %17 = sbr.rel (0) target = $region5
    $region4: #{forward.1} parent=1 // pred_region
      %s19 = ssub.s32 16, 16
      %20 = vsyncadd [#allocation5], %s19
      %s22 = sshll.u32 %s0, 4
      %s23 = int_to_ptr.vmem [resolvable:$true] %s22
      %25 = dma.vmem_to_smem %s23, 16, [#allocation3], [#allocation5]
    $region5: #{forward.1} parent=1 // pred_fallthru
      _
    // Predicated region
    $region6: #{forward.1} parent=1 // pred_check
      _
    $region7: #{forward.1} parent=1 // pred_check_branch
      %27 = sbr.rel (0) target = $region9
    $region8: #{forward.1} parent=1 // pred_region
      %s29 = ssub.s32 4992, 4992
      %30 = vsyncadd [#allocation4], %s29
      %s31 = sshll.u32 [#allocation6], 4
      %s32 = int_to_ptr.vmem [resolvable:$true] %s31
      %37 = dma.hbm_to_vmem [thread:$0]  %s1, 4992, %s32, [#allocation4], 384, 384, 24
    $region9: #{forward.1} parent=1 // pred_fallthru
      _
    // Predicated region
    $region10: #{forward.1} parent=1 // pred_check
      _
    $region11: #{forward.1} parent=1 // pred_check_branch
      %39 = sbr.rel (0) target = $region13
    $region12: #{forward.1} parent=1 // pred_region
      %s41 = ssub.s32 6144, 6144
      %42 = vsyncadd [#allocation8], %s41
      %s43 = sshll.u32 [#allocation7], 4
      %s44 = int_to_ptr.vmem [resolvable:$true] %s43
      %49 = dma.hbm_to_vmem [thread:$0]  %s2, 6144, %s44, [#allocation8], 128, 128, 8
    $region13: #{forward.1} parent=1 // pred_fallthru
      _
    // Predicated region
    $region14: #{forward.1} parent=1 // pred_check
      _
    $region15: #{forward.1} parent=1 // pred_check_branch
      %51 = sbr.rel (0) target = $region17
    $region16: #{forward.1} parent=1 // pred_region
      %s53 = ssub.s32 2048, 2048
      %54 = vsyncadd [#allocation8], %s53
      %s55 = sshll.u32 [#allocation9], 4
      %s56 = int_to_ptr.vmem [resolvable:$true] %s55
      %61 = dma.hbm_to_vmem [thread:$0]  %s3, 2048, %s56, [#allocation8], 128, 128, 8
    $region17: #{forward.1} parent=1 // pred_fallthru
      _
    // Predicated region
    $region18: #{forward.1} parent=1 // pred_check
      _
    $region19: #{forward.1} parent=1 // pred_check_branch
      %63 = sbr.rel (0) target = $region21
    $region20: #{forward.1} parent=1 // pred_region
      _
    $region21: #{forward.1} parent=1 // pred_fallthru
      _
    // Predicated region
    $region22: #{forward.1} parent=1 // pred_check
      _
    $region23: #{forward.1} parent=1 // pred_check_branch
      %65 = sbr.rel (0) target = $region25
    $region24: #{forward.1} parent=1 // pred_region
      %s67 = ssub.s32 2048, 2048
      %68 = vsyncadd [#allocation11], %s67
      %s69 = sshll.u32 [#allocation10], 4
      %s70 = int_to_ptr.vmem [resolvable:$true] %s69
      %75 = dma.hbm_to_vmem [thread:$0]  %s5, 2048, %s70, [#allocation11], 128, 128, 8
    $region25: #{forward.1} parent=1 // pred_fallthru
      _
    // Predicated region
    $region26: #{forward.1} parent=1 // pred_check
      _
    $region27: #{forward.1} parent=1 // pred_check_branch
      %77 = sbr.rel (0) target = $region29
    $region28: #{forward.1} parent=1 // pred_region
      _
    $region29: #{forward.1} parent=1 // pred_fallthru
      _
    // Predicated region
    $region30: #{forward.1} parent=1 // pred_check
      _
    $region31: #{forward.1} parent=1 // pred_check_branch
      %79 = sbr.rel (0) target = $region33
    $region32: #{forward.1} parent=1 // pred_region
      %80 = dma.done [#allocation5], 16
    $region33: #{forward.1} parent=1 // pred_fallthru
      _
    // Predicated region
    $region34: #{forward.1} parent=1 // pred_check
      _
    $region35: #{forward.1} parent=1 // pred_check_branch
      %82 = sbr.rel (0) target = $region37
    $region36: #{forward.1} parent=1 // pred_region
      %83 = dma.done [#allocation4], 4992
    $region37: #{forward.1} parent=1 // pred_fallthru
      _
    // Predicated region
    $region38: #{forward.1} parent=1 // pred_check
      _
    $region39: #{forward.1} parent=1 // pred_check_branch
      %85 = sbr.rel (0) target = $region41
    $region40: #{forward.1} parent=1 // pred_region
      %86 = dma.done [#allocation8], 6144
    $region41: #{forward.1} parent=1 // pred_fallthru
      _
    // Predicated region
    $region42: #{forward.1} parent=1 // pred_check
      _
    $region43: #{forward.1} parent=1 // pred_check_branch
      %88 = sbr.rel (0) target = $region45
    $region44: #{forward.1} parent=1 // pred_region
      %89 = dma.done [#allocation8], 2048
    $region45: #{forward.1} parent=1 // pred_fallthru
      _
    // Predicated region
    $region46: #{forward.1} parent=1 // pred_check
      _
    $region47: #{forward.1} parent=1 // pred_check_branch
      %91 = sbr.rel (0) target = $region49
    $region48: #{forward.1} parent=1 // pred_region
      %92 = dma.done [#allocation11], 2048
    $region49: #{forward.1} parent=1 // pred_fallthru
      _
    %93 = sfence
    %94 = vst [vmem:[#allocation2] sm:$0xff] 0.0
    %95 = vst [vmem:[#allocation2 + $0x8] sm:$0xff] 0.0
    %96 = vst [vmem:[#allocation2 + $0x10] sm:$0xff] 0.0
    %97 = vst [vmem:[#allocation2 + $0x18] sm:$0xff] 0.0
    %98 = vst [vmem:[#allocation2 + $0x20] sm:$0xff] 0.0
    %99 = vst [vmem:[#allocation2 + $0x28] sm:$0xff] 0.0
    %100 = vst [vmem:[#allocation2 + $0x30] sm:$0xff] 0.0
    %101 = vst [vmem:[#allocation2 + $0x38] sm:$0xff] 0.0
    %102 = vst [vmem:[#allocation2 + $0x40] sm:$0xff] 0.0
    %103 = vst [vmem:[#allocation2 + $0x48] sm:$0xff] 0.0
    %104 = vst [vmem:[#allocation2 + $0x50] sm:$0xff] 0.0
    %105 = vst [vmem:[#allocation2 + $0x58] sm:$0xff] 0.0
    %106 = vst [vmem:[#allocation2 + $0x60] sm:$0xff] 0.0
    %107 = vst [vmem:[#allocation2 + $0x68] sm:$0xff] 0.0
    %108 = vst [vmem:[#allocation2 + $0x70] sm:$0xff] 0.0
    %109 = vst [vmem:[#allocation2 + $0x78] sm:$0xff] 0.0
    %110 = vst [vmem:[#allocation2 + $0x80] sm:$0xff] 0.0
    %111 = vst [vmem:[#allocation2 + $0x88] sm:$0xff] 0.0
    %112 = vst [vmem:[#allocation2 + $0x90] sm:$0xff] 0.0
    %113 = vst [vmem:[#allocation2 + $0x98] sm:$0xff] 0.0
    %114 = vst [vmem:[#allocation2 + $0xa0] sm:$0xff] 0.0
    %115 = vst [vmem:[#allocation2 + $0xa8] sm:$0xff] 0.0
    %116 = vst [vmem:[#allocation2 + $0xb0] sm:$0xff] 0.0
    %117 = vst [vmem:[#allocation2 + $0xb8] sm:$0xff] 0.0
    %s118 = sld [smem:[#allocation3]]
    %s119 = sshra.s32 %s118, 3
    %s120 = sand.u32 %s118, 7
    %s121 = sshra.s32 %s118, 3
    %s122 = sand.u32 %s118, 7
    %s123 = smul.u32 %s119, 3
    %s124 = smul.u32 %s123, 8
    %s125 = sadd.s32 %s124, %s122
    %s126 = scalar_lea.vmem [#allocation6], %s125
    %v127 = vld [vmem:[%s126] ss:$8 sm:$0x7]
    %v128 = vlaneseq
    %vm129 = vcmp.ge.s32.totalorder %v128, 0
    %vm130 = vcmp.lt.s32.totalorder %v128, 384
    %vm131 = vmand %vm129, %vm130
    %132 = vst.msk [vmem:[#allocation2] ss:$8 sm:$0x7] %vm131, %v127
    %133 = vst.msk [vmem:[#allocation2] ss:$8 sm:$0x0] %vm131, %v127
    %s134 = sld [smem:[#allocation3 + $0x8]]
    %s135 = sshra.s32 %s134, 3
    %s136 = sand.u32 %s134, 7
    %s137 = sshra.s32 %s134, 3
    %s138 = sand.u32 %s134, 7
    %s139 = smul.u32 %s135, 3
    %s140 = smul.u32 %s139, 8
    %s141 = sadd.s32 %s140, %s138
    %s142 = scalar_lea.vmem [#allocation6], %s141
    %v143 = vld [vmem:[%s142] ss:$8 sm:$0x7]
    %s144 = scalar_lea.vmem [#allocation2], 1
    %145 = vst.msk [vmem:[%s144] ss:$8 sm:$0x7] %vm131, %v143
    %146 = vst.msk [vmem:[%s144] ss:$8 sm:$0x0] %vm131, %v143
    %s147 = sld [smem:[#allocation3 + $0x1]]
    %s148 = sshra.s32 %s147, 3
    %s149 = sand.u32 %s147, 7
    %s150 = sshra.s32 %s147, 3
    %s151 = sand.u32 %s147, 7
    %s152 = smul.u32 %s148, 3
    %s153 = smul.u32 %s152, 8
    %s154 = sadd.s32 %s153, %s151
    %s155 = scalar_lea.vmem [#allocation6], %s154
    %v156 = vld [vmem:[%s155] ss:$8 sm:$0x7]
    %s157 = scalar_lea.vmem [#allocation2], 24
    %158 = vst.msk [vmem:[%s157] ss:$8 sm:$0x7] %vm131, %v156
    %159 = vst.msk [vmem:[%s157] ss:$8 sm:$0x0] %vm131, %v156
    %s160 = sld [smem:[#allocation3 + $0x9]]
    %s161 = sshra.s32 %s160, 3
    %s162 = sand.u32 %s160, 7
    %s163 = sshra.s32 %s160, 3
    %s164 = sand.u32 %s160, 7
    %s165 = smul.u32 %s161, 3
    %s166 = smul.u32 %s165, 8
    %s167 = sadd.s32 %s166, %s164
    %s168 = scalar_lea.vmem [#allocation6], %s167
    %v169 = vld [vmem:[%s168] ss:$8 sm:$0x7]
    %s170 = scalar_lea.vmem [#allocation2], 25
    %171 = vst.msk [vmem:[%s170] ss:$8 sm:$0x7] %vm131, %v169
    %172 = vst.msk [vmem:[%s170] ss:$8 sm:$0x0] %vm131, %v169
    %s173 = sld [smem:[#allocation3 + $0x2]]
    %s174 = sshra.s32 %s173, 3
    %s175 = sand.u32 %s173, 7
    %s176 = sshra.s32 %s173, 3
    %s177 = sand.u32 %s173, 7
    %s178 = smul.u32 %s174, 3
    %s179 = smul.u32 %s178, 8
    %s180 = sadd.s32 %s179, %s177
    %s181 = scalar_lea.vmem [#allocation6], %s180
    %v182 = vld [vmem:[%s181] ss:$8 sm:$0x7]
    %s183 = scalar_lea.vmem [#allocation2], 48
    %184 = vst.msk [vmem:[%s183] ss:$8 sm:$0x7] %vm131, %v182
    %185 = vst.msk [vmem:[%s183] ss:$8 sm:$0x0] %vm131, %v182
    %s186 = sld [smem:[#allocation3 + $0xa]]
    %s187 = sshra.s32 %s186, 3
    %s188 = sand.u32 %s186, 7
    %s189 = sshra.s32 %s186, 3
    %s190 = sand.u32 %s186, 7
    %s191 = smul.u32 %s187, 3
    %s192 = smul.u32 %s191, 8
    %s193 = sadd.s32 %s192, %s190
    %s194 = scalar_lea.vmem [#allocation6], %s193
    %v195 = vld [vmem:[%s194] ss:$8 sm:$0x7]
    %s196 = scalar_lea.vmem [#allocation2], 49
    %197 = vst.msk [vmem:[%s196] ss:$8 sm:$0x7] %vm131, %v195
    %198 = vst.msk [vmem:[%s196] ss:$8 sm:$0x0] %vm131, %v195
    %s199 = sld [smem:[#allocation3 + $0x3]]
    %s200 = sshra.s32 %s199, 3
    %s201 = sand.u32 %s199, 7
    %s202 = sshra.s32 %s199, 3
    %s203 = sand.u32 %s199, 7
    %s204 = smul.u32 %s200, 3
    %s205 = smul.u32 %s204, 8
    %s206 = sadd.s32 %s205, %s203
    %s207 = scalar_lea.vmem [#allocation6], %s206
    %v208 = vld [vmem:[%s207] ss:$8 sm:$0x7]
    %s209 = scalar_lea.vmem [#allocation2], 72
    %210 = vst.msk [vmem:[%s209] ss:$8 sm:$0x7] %vm131, %v208
    %211 = vst.msk [vmem:[%s209] ss:$8 sm:$0x0] %vm131, %v208
    %s212 = sld [smem:[#allocation3 + $0xb]]
    %s213 = sshra.s32 %s212, 3
    %s214 = sand.u32 %s212, 7
    %s215 = sshra.s32 %s212, 3
    %s216 = sand.u32 %s212, 7
    %s217 = smul.u32 %s213, 3
    %s218 = smul.u32 %s217, 8
    %s219 = sadd.s32 %s218, %s216
    %s220 = scalar_lea.vmem [#allocation6], %s219
    %v221 = vld [vmem:[%s220] ss:$8 sm:$0x7]
    %s222 = scalar_lea.vmem [#allocation2], 73
    %223 = vst.msk [vmem:[%s222] ss:$8 sm:$0x7] %vm131, %v221
    %224 = vst.msk [vmem:[%s222] ss:$8 sm:$0x0] %vm131, %v221
    %s225 = sld [smem:[#allocation3 + $0x4]]
    %s226 = sshra.s32 %s225, 3
    %s227 = sand.u32 %s225, 7
    %s228 = sshra.s32 %s225, 3
    %s229 = sand.u32 %s225, 7
    %s230 = smul.u32 %s226, 3
    %s231 = smul.u32 %s230, 8
    %s232 = sadd.s32 %s231, %s229
    %s233 = scalar_lea.vmem [#allocation6], %s232
    %v234 = vld [vmem:[%s233] ss:$8 sm:$0x7]
    %s235 = scalar_lea.vmem [#allocation2], 96
    %236 = vst.msk [vmem:[%s235] ss:$8 sm:$0x7] %vm131, %v234
    %237 = vst.msk [vmem:[%s235] ss:$8 sm:$0x0] %vm131, %v234
    %s238 = sld [smem:[#allocation3 + $0xc]]
    %s239 = sshra.s32 %s238, 3
    %s240 = sand.u32 %s238, 7
    %s241 = sshra.s32 %s238, 3
    %s242 = sand.u32 %s238, 7
    %s243 = smul.u32 %s239, 3
    %s244 = smul.u32 %s243, 8
    %s245 = sadd.s32 %s244, %s242
    %s246 = scalar_lea.vmem [#allocation6], %s245
    %v247 = vld [vmem:[%s246] ss:$8 sm:$0x7]
    %s248 = scalar_lea.vmem [#allocation2], 97
    %249 = vst.msk [vmem:[%s248] ss:$8 sm:$0x7] %vm131, %v247
    %250 = vst.msk [vmem:[%s248] ss:$8 sm:$0x0] %vm131, %v247
    %s251 = sld [smem:[#allocation3 + $0x5]]
    %s252 = sshra.s32 %s251, 3
    %s253 = sand.u32 %s251, 7
    %s254 = sshra.s32 %s251, 3
    %s255 = sand.u32 %s251, 7
    %s256 = smul.u32 %s252, 3
    %s257 = smul.u32 %s256, 8
    %s258 = sadd.s32 %s257, %s255
    %s259 = scalar_lea.vmem [#allocation6], %s258
    %v260 = vld [vmem:[%s259] ss:$8 sm:$0x7]
    %s261 = scalar_lea.vmem [#allocation2], 120
    %262 = vst.msk [vmem:[%s261] ss:$8 sm:$0x7] %vm131, %v260
    %263 = vst.msk [vmem:[%s261] ss:$8 sm:$0x0] %vm131, %v260
    %s264 = sld [smem:[#allocation3 + $0xd]]
    %s265 = sshra.s32 %s264, 3
    %s266 = sand.u32 %s264, 7
    %s267 = sshra.s32 %s264, 3
    %s268 = sand.u32 %s264, 7
    %s269 = smul.u32 %s265, 3
    %s270 = smul.u32 %s269, 8
    %s271 = sadd.s32 %s270, %s268
    %s272 = scalar_lea.vmem [#allocation6], %s271
    %v273 = vld [vmem:[%s272] ss:$8 sm:$0x7]
    %s274 = scalar_lea.vmem [#allocation2], 121
    %275 = vst.msk [vmem:[%s274] ss:$8 sm:$0x7] %vm131, %v273
    %276 = vst.msk [vmem:[%s274] ss:$8 sm:$0x0] %vm131, %v273
    %s277 = sld [smem:[#allocation3 + $0x6]]
    %s278 = sshra.s32 %s277, 3
    %s279 = sand.u32 %s277, 7
    %s280 = sshra.s32 %s277, 3
    %s281 = sand.u32 %s277, 7
    %s282 = smul.u32 %s278, 3
    %s283 = smul.u32 %s282, 8
    %s284 = sadd.s32 %s283, %s281
    %s285 = scalar_lea.vmem [#allocation6], %s284
    %v286 = vld [vmem:[%s285] ss:$8 sm:$0x7]
    %s287 = scalar_lea.vmem [#allocation2], 144
    %288 = vst.msk [vmem:[%s287] ss:$8 sm:$0x7] %vm131, %v286
    %289 = vst.msk [vmem:[%s287] ss:$8 sm:$0x0] %vm131, %v286
    %s290 = sld [smem:[#allocation3 + $0xe]]
    %s291 = sshra.s32 %s290, 3
    %s292 = sand.u32 %s290, 7
    %s293 = sshra.s32 %s290, 3
    %s294 = sand.u32 %s290, 7
    %s295 = smul.u32 %s291, 3
    %s296 = smul.u32 %s295, 8
    %s297 = sadd.s32 %s296, %s294
    %s298 = scalar_lea.vmem [#allocation6], %s297
    %v299 = vld [vmem:[%s298] ss:$8 sm:$0x7]
    %s300 = scalar_lea.vmem [#allocation2], 145
    %301 = vst.msk [vmem:[%s300] ss:$8 sm:$0x7] %vm131, %v299
    %302 = vst.msk [vmem:[%s300] ss:$8 sm:$0x0] %vm131, %v299
    %s303 = sld [smem:[#allocation3 + $0x7]]
    %s304 = sshra.s32 %s303, 3
    %s305 = sand.u32 %s303, 7
    %s306 = sshra.s32 %s303, 3
    %s307 = sand.u32 %s303, 7
    %s308 = smul.u32 %s304, 3
    %s309 = smul.u32 %s308, 8
    %s310 = sadd.s32 %s309, %s307
    %s311 = scalar_lea.vmem [#allocation6], %s310
    %v312 = vld [vmem:[%s311] ss:$8 sm:$0x7]
    %s313 = scalar_lea.vmem [#allocation2], 168
    %314 = vst.msk [vmem:[%s313] ss:$8 sm:$0x7] %vm131, %v312
    %315 = vst.msk [vmem:[%s313] ss:$8 sm:$0x0] %vm131, %v312
    %s316 = sld [smem:[#allocation3 + $0xf]]
    %s317 = sshra.s32 %s316, 3
    %s318 = sand.u32 %s316, 7
    %s319 = sshra.s32 %s316, 3
    %s320 = sand.u32 %s316, 7
    %s321 = smul.u32 %s317, 3
    %s322 = smul.u32 %s321, 8
    %s323 = sadd.s32 %s322, %s320
    %s324 = scalar_lea.vmem [#allocation6], %s323
    %v325 = vld [vmem:[%s324] ss:$8 sm:$0x7]
    %s326 = scalar_lea.vmem [#allocation2], 169
    %327 = vst.msk [vmem:[%s326] ss:$8 sm:$0x7] %vm131, %v325
    %328 = vst.msk [vmem:[%s326] ss:$8 sm:$0x0] %vm131, %v325
    %v329 = vld [vmem:[#allocation2] sm:$0xff]
    %v330 = vld [vmem:[#allocation2 + $0x8] sm:$0xff]
    %v331 = vld [vmem:[#allocation2 + $0x10] sm:$0xff]
    %v332 = vld [vmem:[#allocation2 + $0x18] sm:$0xff]
    %v333 = vld [vmem:[#allocation2 + $0x20] sm:$0xff]
    %v334 = vld [vmem:[#allocation2 + $0x28] sm:$0xff]
    %v335 = vld [vmem:[#allocation2 + $0x30] sm:$0xff]
    %v336 = vld [vmem:[#allocation2 + $0x38] sm:$0xff]
    %v337 = vld [vmem:[#allocation2 + $0x40] sm:$0xff]
    %v338 = vld [vmem:[#allocation2 + $0x48] sm:$0xff]
    %v339 = vld [vmem:[#allocation2 + $0x50] sm:$0xff]
    %v340 = vld [vmem:[#allocation2 + $0x58] sm:$0xff]
    %v341 = vld [vmem:[#allocation2 + $0x60] sm:$0xff]
    %v342 = vld [vmem:[#allocation2 + $0x68] sm:$0xff]
    %v343 = vld [vmem:[#allocation2 + $0x70] sm:$0xff]
    %v344 = vld [vmem:[#allocation2 + $0x78] sm:$0xff]
    %v345 = vld [vmem:[#allocation2 + $0x80] sm:$0xff]
    %v346 = vld [vmem:[#allocation2 + $0x88] sm:$0xff]
    %v347 = vld [vmem:[#allocation2 + $0x90] sm:$0xff]
    %v348 = vld [vmem:[#allocation2 + $0x98] sm:$0xff]
    %v349 = vld [vmem:[#allocation2 + $0xa0] sm:$0xff]
    %v350 = vld [vmem:[#allocation2 + $0xa8] sm:$0xff]
    %v351 = vld [vmem:[#allocation2 + $0xb0] sm:$0xff]
    %v352 = vld [vmem:[#allocation2 + $0xb8] sm:$0xff]
    %v353 = vld [vmem:[#allocation7] sm:$0xff]
    %v354 = vld [vmem:[#allocation7 + $0x8] sm:$0xff]
    %v355 = vld [vmem:[#allocation7 + $0x10] sm:$0xff]
    %v356 = vld [vmem:[#allocation7 + $0x18] sm:$0xff]
    %v357 = vld [vmem:[#allocation7 + $0x20] sm:$0xff]
    %v358 = vld [vmem:[#allocation7 + $0x28] sm:$0xff]
    %v359 = vld [vmem:[#allocation7 + $0x30] sm:$0xff]
    %v360 = vld [vmem:[#allocation7 + $0x38] sm:$0xff]
    %v361 = vld [vmem:[#allocation7 + $0x40] sm:$0xff]
    %v362 = vld [vmem:[#allocation7 + $0x48] sm:$0xff]
    %v363 = vld [vmem:[#allocation7 + $0x50] sm:$0xff]
    %v364 = vld [vmem:[#allocation7 + $0x58] sm:$0xff]
    %v365 = vld [vmem:[#allocation7 + $0x60] sm:$0xff]
    %v366 = vld [vmem:[#allocation7 + $0x68] sm:$0xff]
    %v367 = vld [vmem:[#allocation7 + $0x70] sm:$0xff]
    %v368 = vld [vmem:[#allocation7 + $0x78] sm:$0xff]
    %v369 = vld [vmem:[#allocation7 + $0x80] sm:$0xff]
    %v370 = vld [vmem:[#allocation7 + $0x88] sm:$0xff]
    %v371 = vld [vmem:[#allocation7 + $0x90] sm:$0xff]
    %v372 = vld [vmem:[#allocation7 + $0x98] sm:$0xff]
    %v373 = vld [vmem:[#allocation7 + $0xa0] sm:$0xff]
    %v374 = vld [vmem:[#allocation7 + $0xa8] sm:$0xff]
    %v375 = vld [vmem:[#allocation7 + $0xb0] sm:$0xff]
    %v376 = vld [vmem:[#allocation7 + $0xb8] sm:$0xff]
    %v377 = vld [vmem:[#allocation7 + $0xc0] sm:$0xff]
    %v378 = vld [vmem:[#allocation7 + $0xc8] sm:$0xff]
    %v379 = vld [vmem:[#allocation7 + $0xd0] sm:$0xff]
    %v380 = vld [vmem:[#allocation7 + $0xd8] sm:$0xff]
    %v381 = vld [vmem:[#allocation7 + $0xe0] sm:$0xff]
    %v382 = vld [vmem:[#allocation7 + $0xe8] sm:$0xff]
    %v383 = vld [vmem:[#allocation7 + $0xf0] sm:$0xff]
    %v384 = vld [vmem:[#allocation7 + $0xf8] sm:$0xff]
    %v385 = vld [vmem:[#allocation7 + $0x100] sm:$0xff]
    %v386 = vld [vmem:[#allocation7 + $0x108] sm:$0xff]
    %v387 = vld [vmem:[#allocation7 + $0x110] sm:$0xff]
    %v388 = vld [vmem:[#allocation7 + $0x118] sm:$0xff]
    %v389 = vld [vmem:[#allocation7 + $0x120] sm:$0xff]
    %v390 = vld [vmem:[#allocation7 + $0x128] sm:$0xff]
    %v391 = vld [vmem:[#allocation7 + $0x130] sm:$0xff]
    %v392 = vld [vmem:[#allocation7 + $0x138] sm:$0xff]
    %v393 = vld [vmem:[#allocation7 + $0x140] sm:$0xff]
    %v394 = vld [vmem:[#allocation7 + $0x148] sm:$0xff]
    %v395 = vld [vmem:[#allocation7 + $0x150] sm:$0xff]
    %v396 = vld [vmem:[#allocation7 + $0x158] sm:$0xff]
    %v397 = vld [vmem:[#allocation7 + $0x160] sm:$0xff]
    %v398 = vld [vmem:[#allocation7 + $0x168] sm:$0xff]
    %v399 = vld [vmem:[#allocation7 + $0x170] sm:$0xff]
    %v400 = vld [vmem:[#allocation7 + $0x178] sm:$0xff]
    %v401 = vld [vmem:[%s4] sm:$0x1]
    %v403 = vlaneseq
    %v404 = vshrl.u32 %v403, 7
    %v405 = vsub.s32 0, %v404
    %v406 = vrot.slane %v401, %v405
    %408 = vmatprep.subr.mxu0 0.0
    %409 = vmatpush1.msra.mxu0 %v353
    %410 = vmatprep.subr.mxu0 0.0
    %411 = vmatpush1.msra.mxu0 %v354
    %412 = vmatprep.subr.mxu0 0.0
    %413 = vmatpush1.msra.mxu0 %v355
    %414 = vmatprep.subr.mxu0 0.0
    %415 = vmatpush1.msra.mxu0 %v356
    %416 = vmatprep.subr.mxu0 0.0
    %417 = vmatpush1.msra.mxu0 %v357
    %418 = vmatprep.subr.mxu0 0.0
    %419 = vmatpush1.msra.mxu0 %v358
    %420 = vmatprep.subr.mxu0 0.0
    %421 = vmatpush1.msra.mxu0 %v359
    %422 = vmatprep.subr.mxu0 0.0
    %423 = vmatpush1.msra.mxu0 %v360
    %424 = vmatprep.subr.mxu0 0.0
    %425 = vmatpush1.msra.mxu0 %v361
    %426 = vmatprep.subr.mxu0 0.0
    %427 = vmatpush1.msra.mxu0 %v362
    %428 = vmatprep.subr.mxu0 0.0
    %429 = vmatpush1.msra.mxu0 %v363
    %430 = vmatprep.subr.mxu0 0.0
    %431 = vmatpush1.msra.mxu0 %v364
    %432 = vmatprep.subr.mxu0 0.0
    %433 = vmatpush1.msra.mxu0 %v365
    %434 = vmatprep.subr.mxu0 0.0
    %435 = vmatpush1.msra.mxu0 %v366
    %436 = vmatprep.subr.mxu0 0.0
    %437 = vmatpush1.msra.mxu0 %v367
    %438 = vmatprep.subr.mxu0 0.0
    %439 = vmatpush1.msra.mxu0 %v368
    %440 = vmatprep.subr.mxu0 0.0
    %441 = vmatpush1.msra.mxu0 %v369
    %442 = vmatprep.subr.mxu0 0.0
    %443 = vmatpush1.msra.mxu0 %v370
    %444 = vmatprep.subr.mxu0 0.0
    %445 = vmatpush1.msra.mxu0 %v371
    %446 = vmatprep.subr.mxu0 0.0
    %447 = vmatpush1.msra.mxu0 %v372
    %448 = vmatprep.subr.mxu0 0.0
    %449 = vmatpush1.msra.mxu0 %v373
    %450 = vmatprep.subr.mxu0 0.0
    %451 = vmatpush1.msra.mxu0 %v374
    %452 = vmatprep.subr.mxu0 0.0
    %453 = vmatpush1.msra.mxu0 %v375
    %454 = vmatprep.subr.mxu0 0.0
    %455 = vmatpush1.msra.mxu0 %v376
    %456 = vmatprep.subr.mxu0 0.0
    %457 = vmatpush1.msra.mxu0 %v377
    %458 = vmatprep.subr.mxu0 0.0
    %459 = vmatpush1.msra.mxu0 %v378
    %460 = vmatprep.subr.mxu0 0.0
    %461 = vmatpush1.msra.mxu0 %v379
    %462 = vmatprep.subr.mxu0 0.0
    %463 = vmatpush1.msra.mxu0 %v380
    %464 = vmatprep.subr.mxu0 0.0
    %465 = vmatpush1.msra.mxu0 %v381
    %466 = vmatprep.subr.mxu0 0.0
    %467 = vmatpush1.msra.mxu0 %v382
    %468 = vmatprep.subr.mxu0 0.0
    %469 = vmatpush1.msra.mxu0 %v383
    %470 = vmatprep.subr.mxu0 0.0
    %471 = vmatpush1.msra.mxu0 %v384
    %472 = vmatprep.mubr.f32.mxu0 %v330
    %473 = vmatmul.mubr.f32.gmra.mrb[0].mxu0 %v329
    %v474 = vpop.f32.mrb[0].mxu0
    %v475 = vadd.f32 %v406, %v474
    %v476 = vpop.f32.mrb[0].mxu0
    %477 = vmatprep.mubr.f32.mxu0 %v333
    %478 = vmatmul.mubr.f32.gmra.mrb[0].mxu0 %v332
    %v479 = vpop.f32.mrb[0].mxu0
    %v480 = vadd.f32 %v406, %v479
    %v481 = vpop.f32.mrb[0].mxu0
    %482 = vmatprep.mubr.f32.mxu0 %v336
    %483 = vmatmul.mubr.f32.gmra.mrb[0].mxu0 %v335
    %v484 = vpop.f32.mrb[0].mxu0
    %v485 = vadd.f32 %v406, %v484
    %v486 = vpop.f32.mrb[0].mxu0
    %487 = vmatprep.mubr.f32.mxu0 %v339
    %488 = vmatmul.mubr.f32.gmra.mrb[0].mxu0 %v338
    %v489 = vpop.f32.mrb[0].mxu0
    %v490 = vadd.f32 %v406, %v489
    %v491 = vpop.f32.mrb[0].mxu0
    %492 = vmatprep.mubr.f32.mxu0 %v342
    %493 = vmatmul.mubr.f32.gmra.mrb[0].mxu0 %v341
    %v494 = vpop.f32.mrb[0].mxu0
    %v495 = vadd.f32 %v406, %v494
    %v496 = vpop.f32.mrb[0].mxu0
    %497 = vmatprep.mubr.f32.mxu0 %v345
    %498 = vmatmul.mubr.f32.gmra.mrb[0].mxu0 %v344
    %v499 = vpop.f32.mrb[0].mxu0
    %v500 = vadd.f32 %v406, %v499
    %v501 = vpop.f32.mrb[0].mxu0
    %502 = vmatprep.mubr.f32.mxu0 %v348
    %503 = vmatmul.mubr.f32.gmra.mrb[0].mxu0 %v347
    %v504 = vpop.f32.mrb[0].mxu0
    %v505 = vadd.f32 %v406, %v504
    %v506 = vpop.f32.mrb[0].mxu0
    %507 = vmatprep.mubr.f32.mxu0 %v351
    %508 = vmatmul.mubr.f32.gmra.mrb[0].mxu0 %v350
    %v509 = vpop.f32.mrb[0].mxu0
    %v510 = vadd.f32 %v406, %v509
    %v511 = vpop.f32.mrb[0].mxu0
    %512 = vdwg.mxu0
    %513 = vmatprep.subr.mxu0 0.0
    %514 = vmatpush1.msra.mxu0 %v385
    %515 = vmatprep.subr.mxu0 0.0
    %516 = vmatpush1.msra.mxu0 %v386
    %517 = vmatprep.subr.mxu0 0.0
    %518 = vmatpush1.msra.mxu0 %v387
    %519 = vmatprep.subr.mxu0 0.0
    %520 = vmatpush1.msra.mxu0 %v388
    %521 = vmatprep.subr.mxu0 0.0
    %522 = vmatpush1.msra.mxu0 %v389
    %523 = vmatprep.subr.mxu0 0.0
    %524 = vmatpush1.msra.mxu0 %v390
    %525 = vmatprep.subr.mxu0 0.0
    %526 = vmatpush1.msra.mxu0 %v391
    %527 = vmatprep.subr.mxu0 0.0
    %528 = vmatpush1.msra.mxu0 %v392
    %529 = vmatprep.subr.mxu0 0.0
    %530 = vmatpush1.msra.mxu0 %v393
    %531 = vmatprep.subr.mxu0 0.0
    %532 = vmatpush1.msra.mxu0 %v394
    %533 = vmatprep.subr.mxu0 0.0
    %534 = vmatpush1.msra.mxu0 %v395
    %535 = vmatprep.subr.mxu0 0.0
    %536 = vmatpush1.msra.mxu0 %v396
    %537 = vmatprep.subr.mxu0 0.0
    %538 = vmatpush1.msra.mxu0 %v397
    %539 = vmatprep.subr.mxu0 0.0
    %540 = vmatpush1.msra.mxu0 %v398
    %541 = vmatprep.subr.mxu0 0.0
    %542 = vmatpush1.msra.mxu0 %v399
    %543 = vmatprep.subr.mxu0 0.0
    %544 = vmatpush1.msra.mxu0 %v400
    %545 = vmatprep.subr.mxu0 0.0
    %546 = vmatpush1.msra.mxu0 0.0
    %547 = vmatprep.subr.mxu0 0.0
    %548 = vmatpush1.msra.mxu0 0.0
    %549 = vmatprep.subr.mxu0 0.0
    %550 = vmatpush1.msra.mxu0 0.0
    %551 = vmatprep.subr.mxu0 0.0
    %552 = vmatpush1.msra.mxu0 0.0
    %553 = vmatprep.subr.mxu0 0.0
    %554 = vmatpush1.msra.mxu0 0.0
    %555 = vmatprep.subr.mxu0 0.0
    %556 = vmatpush1.msra.mxu0 0.0
    %557 = vmatprep.subr.mxu0 0.0
    %558 = vmatpush1.msra.mxu0 0.0
    %559 = vmatprep.subr.mxu0 0.0
    %560 = vmatpush1.msra.mxu0 0.0
    %561 = vmatprep.subr.mxu0 0.0
    %562 = vmatpush1.msra.mxu0 0.0
    %563 = vmatprep.subr.mxu0 0.0
    %564 = vmatpush1.msra.mxu0 0.0
    %565 = vmatprep.subr.mxu0 0.0
    %566 = vmatpush1.msra.mxu0 0.0
    %567 = vmatprep.subr.mxu0 0.0
    %568 = vmatpush1.msra.mxu0 0.0
    %569 = vmatprep.subr.mxu0 0.0
    %570 = vmatpush1.msra.mxu0 0.0
    %571 = vmatprep.subr.mxu0 0.0
    %572 = vmatpush1.msra.mxu0 0.0
    %573 = vmatprep.subr.mxu0 0.0
    %574 = vmatpush1.msra.mxu0 0.0
    %575 = vmatprep.subr.mxu0 0.0
    %576 = vmatpush1.msra.mxu0 0.0
    %577 = vmatprep.mubr.f32.mxu0 0.0
    %578 = vmatmul.mubr.f32.gmra.mrb[0].mxu0 %v331
    %v579 = vpop.f32.mrb[0].mxu0
    %v580 = vadd.f32 %v475, %v579
    %v581 = vpop.f32.mrb[0].mxu0
    %582 = vmatprep.mubr.f32.mxu0 0.0
    %583 = vmatmul.mubr.f32.gmra.mrb[0].mxu0 %v334
    %v584 = vpop.f32.mrb[0].mxu0
    %v585 = vadd.f32 %v480, %v584
    %v586 = vpop.f32.mrb[0].mxu0
    %587 = vmatprep.mubr.f32.mxu0 0.0
    %588 = vmatmul.mubr.f32.gmra.mrb[0].mxu0 %v337
    %v589 = vpop.f32.mrb[0].mxu0
    %v590 = vadd.f32 %v485, %v589
    %v591 = vpop.f32.mrb[0].mxu0
    %592 = vmatprep.mubr.f32.mxu0 0.0
    %593 = vmatmul.mubr.f32.gmra.mrb[0].mxu0 %v340
    %v594 = vpop.f32.mrb[0].mxu0
    %v595 = vadd.f32 %v490, %v594
    %v596 = vpop.f32.mrb[0].mxu0
    %597 = vmatprep.mubr.f32.mxu0 0.0
    %598 = vmatmul.mubr.f32.gmra.mrb[0].mxu0 %v343
    %v599 = vpop.f32.mrb[0].mxu0
    %v600 = vadd.f32 %v495, %v599
    %v601 = vpop.f32.mrb[0].mxu0
    %602 = vmatprep.mubr.f32.mxu0 0.0
    %603 = vmatmul.mubr.f32.gmra.mrb[0].mxu0 %v346
    %v604 = vpop.f32.mrb[0].mxu0
    %v605 = vadd.f32 %v500, %v604
    %v606 = vpop.f32.mrb[0].mxu0
    %607 = vmatprep.mubr.f32.mxu0 0.0
    %608 = vmatmul.mubr.f32.gmra.mrb[0].mxu0 %v349
    %v609 = vpop.f32.mrb[0].mxu0
    %v610 = vadd.f32 %v505, %v609
    %v611 = vpop.f32.mrb[0].mxu0
    %612 = vmatprep.mubr.f32.mxu0 0.0
    %613 = vmatmul.mubr.f32.gmra.mrb[0].mxu0 %v352
    %v614 = vpop.f32.mrb[0].mxu0
    %v615 = vadd.f32 %v510, %v614
    %v616 = vpop.f32.mrb[0].mxu0
    %617 = vdwg.mxu0
    %v618 = vld [vmem:[#allocation9] sm:$0xff]
    %v619 = vld [vmem:[#allocation9 + $0x8] sm:$0xff]
    %v620 = vld [vmem:[#allocation9 + $0x10] sm:$0xff]
    %v621 = vld [vmem:[#allocation9 + $0x18] sm:$0xff]
    %v622 = vld [vmem:[#allocation9 + $0x20] sm:$0xff]
    %v623 = vld [vmem:[#allocation9 + $0x28] sm:$0xff]
    %v624 = vld [vmem:[#allocation9 + $0x30] sm:$0xff]
    %v625 = vld [vmem:[#allocation9 + $0x38] sm:$0xff]
    %v626 = vld [vmem:[#allocation9 + $0x40] sm:$0xff]
    %v627 = vld [vmem:[#allocation9 + $0x48] sm:$0xff]
    %v628 = vld [vmem:[#allocation9 + $0x50] sm:$0xff]
    %v629 = vld [vmem:[#allocation9 + $0x58] sm:$0xff]
    %v630 = vld [vmem:[#allocation9 + $0x60] sm:$0xff]
    %v631 = vld [vmem:[#allocation9 + $0x68] sm:$0xff]
    %v632 = vld [vmem:[#allocation9 + $0x70] sm:$0xff]
    %v633 = vld [vmem:[#allocation9 + $0x78] sm:$0xff]
    %634 = vmatprep.subr.mxu0 0.0
    %635 = vmatpush1.msra.mxu0 %v618
    %636 = vmatprep.subr.mxu0 0.0
    %637 = vmatpush1.msra.mxu0 %v619
    %638 = vmatprep.subr.mxu0 0.0
    %639 = vmatpush1.msra.mxu0 %v620
    %640 = vmatprep.subr.mxu0 0.0
    %641 = vmatpush1.msra.mxu0 %v621
    %642 = vmatprep.subr.mxu0 0.0
    %643 = vmatpush1.msra.mxu0 %v622
    %644 = vmatprep.subr.mxu0 0.0
    %645 = vmatpush1.msra.mxu0 %v623
    %646 = vmatprep.subr.mxu0 0.0
    %647 = vmatpush1.msra.mxu0 %v624
    %648 = vmatprep.subr.mxu0 0.0
    %649 = vmatpush1.msra.mxu0 %v625
    %650 = vmatprep.subr.mxu0 0.0
    %651 = vmatpush1.msra.mxu0 %v626
    %652 = vmatprep.subr.mxu0 0.0
    %653 = vmatpush1.msra.mxu0 %v627
    %654 = vmatprep.subr.mxu0 0.0
    %655 = vmatpush1.msra.mxu0 %v628
    %656 = vmatprep.subr.mxu0 0.0
    %657 = vmatpush1.msra.mxu0 %v629
    %658 = vmatprep.subr.mxu0 0.0
    %659 = vmatpush1.msra.mxu0 %v630
    %660 = vmatprep.subr.mxu0 0.0
    %661 = vmatpush1.msra.mxu0 %v631
    %662 = vmatprep.subr.mxu0 0.0
    %663 = vmatpush1.msra.mxu0 %v632
    %664 = vmatprep.subr.mxu0 0.0
    %665 = vmatpush1.msra.mxu0 %v633
    %666 = vmatprep.subr.mxu0 0.0
    %667 = vmatpush1.msra.mxu0 0.0
    %668 = vmatprep.subr.mxu0 0.0
    %669 = vmatpush1.msra.mxu0 0.0
    %670 = vmatprep.subr.mxu0 0.0
    %671 = vmatpush1.msra.mxu0 0.0
    %672 = vmatprep.subr.mxu0 0.0
    %673 = vmatpush1.msra.mxu0 0.0
    %674 = vmatprep.subr.mxu0 0.0
    %675 = vmatpush1.msra.mxu0 0.0
    %676 = vmatprep.subr.mxu0 0.0
    %677 = vmatpush1.msra.mxu0 0.0
    %678 = vmatprep.subr.mxu0 0.0
    %679 = vmatpush1.msra.mxu0 0.0
    %680 = vmatprep.subr.mxu0 0.0
    %681 = vmatpush1.msra.mxu0 0.0
    %682 = vmatprep.subr.mxu0 0.0
    %683 = vmatpush1.msra.mxu0 0.0
    %684 = vmatprep.subr.mxu0 0.0
    %685 = vmatpush1.msra.mxu0 0.0
    %686 = vmatprep.subr.mxu0 0.0
    %687 = vmatpush1.msra.mxu0 0.0
    %688 = vmatprep.subr.mxu0 0.0
    %689 = vmatpush1.msra.mxu0 0.0
    %690 = vmatprep.subr.mxu0 0.0
    %691 = vmatpush1.msra.mxu0 0.0
    %692 = vmatprep.subr.mxu0 0.0
    %693 = vmatpush1.msra.mxu0 0.0
    %694 = vmatprep.subr.mxu0 0.0
    %695 = vmatpush1.msra.mxu0 0.0
    %696 = vmatprep.subr.mxu0 0.0
    %697 = vmatpush1.msra.mxu0 0.0
    %698 = vmatprep.mubr.f32.mxu0 0.0
    %699 = vmatmul.mubr.f32.gmra.mrb[0].mxu0 0.0
    %v700 = vpop.f32.mrb[0].mxu0
    %v701 = vadd.f32 0.0, %v700
    %v702 = vpop.f32.mrb[0].mxu0
    %703 = vdwg.mxu0
    %v704 = vadd.f32 %v580, %v701
    %v705 = vtanh.pop %v704
    %706 = vmatprep.subr.mxu0 0.0
    %707 = vmatpush1.msra.mxu0 %v618
    %708 = vmatprep.subr.mxu0 0.0
    %709 = vmatpush1.msra.mxu0 %v619
    %710 = vmatprep.subr.mxu0 0.0
    %711 = vmatpush1.msra.mxu0 %v620
    %712 = vmatprep.subr.mxu0 0.0
    %713 = vmatpush1.msra.mxu0 %v621
    %714 = vmatprep.subr.mxu0 0.0
    %715 = vmatpush1.msra.mxu0 %v622
    %716 = vmatprep.subr.mxu0 0.0
    %717 = vmatpush1.msra.mxu0 %v623
    %718 = vmatprep.subr.mxu0 0.0
    %719 = vmatpush1.msra.mxu0 %v624
    %720 = vmatprep.subr.mxu0 0.0
    %721 = vmatpush1.msra.mxu0 %v625
    %722 = vmatprep.subr.mxu0 0.0
    %723 = vmatpush1.msra.mxu0 %v626
    %724 = vmatprep.subr.mxu0 0.0
    %725 = vmatpush1.msra.mxu0 %v627
    %726 = vmatprep.subr.mxu0 0.0
    %727 = vmatpush1.msra.mxu0 %v628
    %728 = vmatprep.subr.mxu0 0.0
    %729 = vmatpush1.msra.mxu0 %v629
    %730 = vmatprep.subr.mxu0 0.0
    %731 = vmatpush1.msra.mxu0 %v630
    %732 = vmatprep.subr.mxu0 0.0
    %733 = vmatpush1.msra.mxu0 %v631
    %734 = vmatprep.subr.mxu0 0.0
    %735 = vmatpush1.msra.mxu0 %v632
    %736 = vmatprep.subr.mxu0 0.0
    %737 = vmatpush1.msra.mxu0 %v633
    %738 = vmatprep.subr.mxu0 0.0
    %739 = vmatpush1.msra.mxu0 0.0
    %740 = vmatprep.subr.mxu0 0.0
    %741 = vmatpush1.msra.mxu0 0.0
    %742 = vmatprep.subr.mxu0 0.0
    %743 = vmatpush1.msra.mxu0 0.0
    %744 = vmatprep.subr.mxu0 0.0
    %745 = vmatpush1.msra.mxu0 0.0
    %746 = vmatprep.subr.mxu0 0.0
    %747 = vmatpush1.msra.mxu0 0.0
    %748 = vmatprep.subr.mxu0 0.0
    %749 = vmatpush1.msra.mxu0 0.0
    %750 = vmatprep.subr.mxu0 0.0
    %751 = vmatpush1.msra.mxu0 0.0
    %752 = vmatprep.subr.mxu0 0.0
    %753 = vmatpush1.msra.mxu0 0.0
    %754 = vmatprep.subr.mxu0 0.0
    %755 = vmatpush1.msra.mxu0 0.0
    %756 = vmatprep.subr.mxu0 0.0
    %757 = vmatpush1.msra.mxu0 0.0
    %758 = vmatprep.subr.mxu0 0.0
    %759 = vmatpush1.msra.mxu0 0.0
    %760 = vmatprep.subr.mxu0 0.0
    %761 = vmatpush1.msra.mxu0 0.0
    %762 = vmatprep.subr.mxu0 0.0
    %763 = vmatpush1.msra.mxu0 0.0
    %764 = vmatprep.subr.mxu0 0.0
    %765 = vmatpush1.msra.mxu0 0.0
    %766 = vmatprep.subr.mxu0 0.0
    %767 = vmatpush1.msra.mxu0 0.0
    %768 = vmatprep.subr.mxu0 0.0
    %769 = vmatpush1.msra.mxu0 0.0
    %770 = vmatprep.mubr.f32.mxu0 0.0
    %771 = vmatmul.mubr.f32.gmra.mrb[0].mxu0 %v705
    %v772 = vpop.f32.mrb[0].mxu0
    %v773 = vadd.f32 0.0, %v772
    %v774 = vpop.f32.mrb[0].mxu0
    %775 = vdwg.mxu0
    %v776 = vadd.f32 %v585, %v773
    %v777 = vtanh.pop %v776
    %778 = vmatprep.subr.mxu0 0.0
    %779 = vmatpush1.msra.mxu0 %v618
    %780 = vmatprep.subr.mxu0 0.0
    %781 = vmatpush1.msra.mxu0 %v619
    %782 = vmatprep.subr.mxu0 0.0
    %783 = vmatpush1.msra.mxu0 %v620
    %784 = vmatprep.subr.mxu0 0.0
    %785 = vmatpush1.msra.mxu0 %v621
    %786 = vmatprep.subr.mxu0 0.0
    %787 = vmatpush1.msra.mxu0 %v622
    %788 = vmatprep.subr.mxu0 0.0
    %789 = vmatpush1.msra.mxu0 %v623
    %790 = vmatprep.subr.mxu0 0.0
    %791 = vmatpush1.msra.mxu0 %v624
    %792 = vmatprep.subr.mxu0 0.0
    %793 = vmatpush1.msra.mxu0 %v625
    %794 = vmatprep.subr.mxu0 0.0
    %795 = vmatpush1.msra.mxu0 %v626
    %796 = vmatprep.subr.mxu0 0.0
    %797 = vmatpush1.msra.mxu0 %v627
    %798 = vmatprep.subr.mxu0 0.0
    %799 = vmatpush1.msra.mxu0 %v628
    %800 = vmatprep.subr.mxu0 0.0
    %801 = vmatpush1.msra.mxu0 %v629
    %802 = vmatprep.subr.mxu0 0.0
    %803 = vmatpush1.msra.mxu0 %v630
    %804 = vmatprep.subr.mxu0 0.0
    %805 = vmatpush1.msra.mxu0 %v631
    %806 = vmatprep.subr.mxu0 0.0
    %807 = vmatpush1.msra.mxu0 %v632
    %808 = vmatprep.subr.mxu0 0.0
    %809 = vmatpush1.msra.mxu0 %v633
    %810 = vmatprep.subr.mxu0 0.0
    %811 = vmatpush1.msra.mxu0 0.0
    %812 = vmatprep.subr.mxu0 0.0
    %813 = vmatpush1.msra.mxu0 0.0
    %814 = vmatprep.subr.mxu0 0.0
    %815 = vmatpush1.msra.mxu0 0.0
    %816 = vmatprep.subr.mxu0 0.0
    %817 = vmatpush1.msra.mxu0 0.0
    %818 = vmatprep.subr.mxu0 0.0
    %819 = vmatpush1.msra.mxu0 0.0
    %820 = vmatprep.subr.mxu0 0.0
    %821 = vmatpush1.msra.mxu0 0.0
    %822 = vmatprep.subr.mxu0 0.0
    %823 = vmatpush1.msra.mxu0 0.0
    %824 = vmatprep.subr.mxu0 0.0
    %825 = vmatpush1.msra.mxu0 0.0
    %826 = vmatprep.subr.mxu0 0.0
    %827 = vmatpush1.msra.mxu0 0.0
    %828 = vmatprep.subr.mxu0 0.0
    %829 = vmatpush1.msra.mxu0 0.0
    %830 = vmatprep.subr.mxu0 0.0
    %831 = vmatpush1.msra.mxu0 0.0
    %832 = vmatprep.subr.mxu0 0.0
    %833 = vmatpush1.msra.mxu0 0.0
    %834 = vmatprep.subr.mxu0 0.0
    %835 = vmatpush1.msra.mxu0 0.0
    %836 = vmatprep.subr.mxu0 0.0
    %837 = vmatpush1.msra.mxu0 0.0
    %838 = vmatprep.subr.mxu0 0.0
    %839 = vmatpush1.msra.mxu0 0.0
    %840 = vmatprep.subr.mxu0 0.0
    %841 = vmatpush1.msra.mxu0 0.0
    %842 = vmatprep.mubr.f32.mxu0 0.0
    %843 = vmatmul.mubr.f32.gmra.mrb[0].mxu0 %v777
    %v844 = vpop.f32.mrb[0].mxu0
    %v845 = vadd.f32 0.0, %v844
    %v846 = vpop.f32.mrb[0].mxu0
    %847 = vdwg.mxu0
    %v848 = vadd.f32 %v590, %v845
    %v849 = vtanh.pop %v848
    %850 = vmatprep.subr.mxu0 0.0
    %851 = vmatpush1.msra.mxu0 %v618
    %852 = vmatprep.subr.mxu0 0.0
    %853 = vmatpush1.msra.mxu0 %v619
    %854 = vmatprep.subr.mxu0 0.0
    %855 = vmatpush1.msra.mxu0 %v620
    %856 = vmatprep.subr.mxu0 0.0
    %857 = vmatpush1.msra.mxu0 %v621
    %858 = vmatprep.subr.mxu0 0.0
    %859 = vmatpush1.msra.mxu0 %v622
    %860 = vmatprep.subr.mxu0 0.0
    %861 = vmatpush1.msra.mxu0 %v623
    %862 = vmatprep.subr.mxu0 0.0
    %863 = vmatpush1.msra.mxu0 %v624
    %864 = vmatprep.subr.mxu0 0.0
    %865 = vmatpush1.msra.mxu0 %v625
    %866 = vmatprep.subr.mxu0 0.0
    %867 = vmatpush1.msra.mxu0 %v626
    %868 = vmatprep.subr.mxu0 0.0
    %869 = vmatpush1.msra.mxu0 %v627
    %870 = vmatprep.subr.mxu0 0.0
    %871 = vmatpush1.msra.mxu0 %v628
    %872 = vmatprep.subr.mxu0 0.0
    %873 = vmatpush1.msra.mxu0 %v629
    %874 = vmatprep.subr.mxu0 0.0
    %875 = vmatpush1.msra.mxu0 %v630
    %876 = vmatprep.subr.mxu0 0.0
    %877 = vmatpush1.msra.mxu0 %v631
    %878 = vmatprep.subr.mxu0 0.0
    %879 = vmatpush1.msra.mxu0 %v632
    %880 = vmatprep.subr.mxu0 0.0
    %881 = vmatpush1.msra.mxu0 %v633
    %882 = vmatprep.subr.mxu0 0.0
    %883 = vmatpush1.msra.mxu0 0.0
    %884 = vmatprep.subr.mxu0 0.0
    %885 = vmatpush1.msra.mxu0 0.0
    %886 = vmatprep.subr.mxu0 0.0
    %887 = vmatpush1.msra.mxu0 0.0
    %888 = vmatprep.subr.mxu0 0.0
    %889 = vmatpush1.msra.mxu0 0.0
    %890 = vmatprep.subr.mxu0 0.0
    %891 = vmatpush1.msra.mxu0 0.0
    %892 = vmatprep.subr.mxu0 0.0
    %893 = vmatpush1.msra.mxu0 0.0
    %894 = vmatprep.subr.mxu0 0.0
    %895 = vmatpush1.msra.mxu0 0.0
    %896 = vmatprep.subr.mxu0 0.0
    %897 = vmatpush1.msra.mxu0 0.0
    %898 = vmatprep.subr.mxu0 0.0
    %899 = vmatpush1.msra.mxu0 0.0
    %900 = vmatprep.subr.mxu0 0.0
    %901 = vmatpush1.msra.mxu0 0.0
    %902 = vmatprep.subr.mxu0 0.0
    %903 = vmatpush1.msra.mxu0 0.0
    %904 = vmatprep.subr.mxu0 0.0
    %905 = vmatpush1.msra.mxu0 0.0
    %906 = vmatprep.subr.mxu0 0.0
    %907 = vmatpush1.msra.mxu0 0.0
    %908 = vmatprep.subr.mxu0 0.0
    %909 = vmatpush1.msra.mxu0 0.0
    %910 = vmatprep.subr.mxu0 0.0
    %911 = vmatpush1.msra.mxu0 0.0
    %912 = vmatprep.subr.mxu0 0.0
    %913 = vmatpush1.msra.mxu0 0.0
    %914 = vmatprep.mubr.f32.mxu0 0.0
    %915 = vmatmul.mubr.f32.gmra.mrb[0].mxu0 %v849
    %v916 = vpop.f32.mrb[0].mxu0
    %v917 = vadd.f32 0.0, %v916
    %v918 = vpop.f32.mrb[0].mxu0
    %919 = vdwg.mxu0
    %v920 = vadd.f32 %v595, %v917
    %v921 = vtanh.pop %v920
    %922 = vmatprep.subr.mxu0 0.0
    %923 = vmatpush1.msra.mxu0 %v618
    %924 = vmatprep.subr.mxu0 0.0
    %925 = vmatpush1.msra.mxu0 %v619
    %926 = vmatprep.subr.mxu0 0.0
    %927 = vmatpush1.msra.mxu0 %v620
    %928 = vmatprep.subr.mxu0 0.0
    %929 = vmatpush1.msra.mxu0 %v621
    %930 = vmatprep.subr.mxu0 0.0
    %931 = vmatpush1.msra.mxu0 %v622
    %932 = vmatprep.subr.mxu0 0.0
    %933 = vmatpush1.msra.mxu0 %v623
    %934 = vmatprep.subr.mxu0 0.0
    %935 = vmatpush1.msra.mxu0 %v624
    %936 = vmatprep.subr.mxu0 0.0
    %937 = vmatpush1.msra.mxu0 %v625
    %938 = vmatprep.subr.mxu0 0.0
    %939 = vmatpush1.msra.mxu0 %v626
    %940 = vmatprep.subr.mxu0 0.0
    %941 = vmatpush1.msra.mxu0 %v627
    %942 = vmatprep.subr.mxu0 0.0
    %943 = vmatpush1.msra.mxu0 %v628
    %944 = vmatprep.subr.mxu0 0.0
    %945 = vmatpush1.msra.mxu0 %v629
    %946 = vmatprep.subr.mxu0 0.0
    %947 = vmatpush1.msra.mxu0 %v630
    %948 = vmatprep.subr.mxu0 0.0
    %949 = vmatpush1.msra.mxu0 %v631
    %950 = vmatprep.subr.mxu0 0.0
    %951 = vmatpush1.msra.mxu0 %v632
    %952 = vmatprep.subr.mxu0 0.0
    %953 = vmatpush1.msra.mxu0 %v633
    %954 = vmatprep.subr.mxu0 0.0
    %955 = vmatpush1.msra.mxu0 0.0
    %956 = vmatprep.subr.mxu0 0.0
    %957 = vmatpush1.msra.mxu0 0.0
    %958 = vmatprep.subr.mxu0 0.0
    %959 = vmatpush1.msra.mxu0 0.0
    %960 = vmatprep.subr.mxu0 0.0
    %961 = vmatpush1.msra.mxu0 0.0
    %962 = vmatprep.subr.mxu0 0.0
    %963 = vmatpush1.msra.mxu0 0.0
    %964 = vmatprep.subr.mxu0 0.0
    %965 = vmatpush1.msra.mxu0 0.0
    %966 = vmatprep.subr.mxu0 0.0
    %967 = vmatpush1.msra.mxu0 0.0
    %968 = vmatprep.subr.mxu0 0.0
    %969 = vmatpush1.msra.mxu0 0.0
    %970 = vmatprep.subr.mxu0 0.0
    %971 = vmatpush1.msra.mxu0 0.0
    %972 = vmatprep.subr.mxu0 0.0
    %973 = vmatpush1.msra.mxu0 0.0
    %974 = vmatprep.subr.mxu0 0.0
    %975 = vmatpush1.msra.mxu0 0.0
    %976 = vmatprep.subr.mxu0 0.0
    %977 = vmatpush1.msra.mxu0 0.0
    %978 = vmatprep.subr.mxu0 0.0
    %979 = vmatpush1.msra.mxu0 0.0
    %980 = vmatprep.subr.mxu0 0.0
    %981 = vmatpush1.msra.mxu0 0.0
    %982 = vmatprep.subr.mxu0 0.0
    %983 = vmatpush1.msra.mxu0 0.0
    %984 = vmatprep.subr.mxu0 0.0
    %985 = vmatpush1.msra.mxu0 0.0
    %986 = vmatprep.mubr.f32.mxu0 0.0
    %987 = vmatmul.mubr.f32.gmra.mrb[0].mxu0 %v921
    %v988 = vpop.f32.mrb[0].mxu0
    %v989 = vadd.f32 0.0, %v988
    %v990 = vpop.f32.mrb[0].mxu0
    %991 = vdwg.mxu0
    %v992 = vadd.f32 %v600, %v989
    %v993 = vtanh.pop %v992
    %994 = vmatprep.subr.mxu0 0.0
    %995 = vmatpush1.msra.mxu0 %v618
    %996 = vmatprep.subr.mxu0 0.0
    %997 = vmatpush1.msra.mxu0 %v619
    %998 = vmatprep.subr.mxu0 0.0
    %999 = vmatpush1.msra.mxu0 %v620
    %1000 = vmatprep.subr.mxu0 0.0
    %1001 = vmatpush1.msra.mxu0 %v621
    %1002 = vmatprep.subr.mxu0 0.0
    %1003 = vmatpush1.msra.mxu0 %v622
    %1004 = vmatprep.subr.mxu0 0.0
    %1005 = vmatpush1.msra.mxu0 %v623
    %1006 = vmatprep.subr.mxu0 0.0
    %1007 = vmatpush1.msra.mxu0 %v624
    %1008 = vmatprep.subr.mxu0 0.0
    %1009 = vmatpush1.msra.mxu0 %v625
    %1010 = vmatprep.subr.mxu0 0.0
    %1011 = vmatpush1.msra.mxu0 %v626
    %1012 = vmatprep.subr.mxu0 0.0
    %1013 = vmatpush1.msra.mxu0 %v627
    %1014 = vmatprep.subr.mxu0 0.0
    %1015 = vmatpush1.msra.mxu0 %v628
    %1016 = vmatprep.subr.mxu0 0.0
    %1017 = vmatpush1.msra.mxu0 %v629
    %1018 = vmatprep.subr.mxu0 0.0
    %1019 = vmatpush1.msra.mxu0 %v630
    %1020 = vmatprep.subr.mxu0 0.0
    %1021 = vmatpush1.msra.mxu0 %v631
    %1022 = vmatprep.subr.mxu0 0.0
    %1023 = vmatpush1.msra.mxu0 %v632
    %1024 = vmatprep.subr.mxu0 0.0
    %1025 = vmatpush1.msra.mxu0 %v633
    %1026 = vmatprep.subr.mxu0 0.0
    %1027 = vmatpush1.msra.mxu0 0.0
    %1028 = vmatprep.subr.mxu0 0.0
    %1029 = vmatpush1.msra.mxu0 0.0
    %1030 = vmatprep.subr.mxu0 0.0
    %1031 = vmatpush1.msra.mxu0 0.0
    %1032 = vmatprep.subr.mxu0 0.0
    %1033 = vmatpush1.msra.mxu0 0.0
    %1034 = vmatprep.subr.mxu0 0.0
    %1035 = vmatpush1.msra.mxu0 0.0
    %1036 = vmatprep.subr.mxu0 0.0
    %1037 = vmatpush1.msra.mxu0 0.0
    %1038 = vmatprep.subr.mxu0 0.0
    %1039 = vmatpush1.msra.mxu0 0.0
    %1040 = vmatprep.subr.mxu0 0.0
    %1041 = vmatpush1.msra.mxu0 0.0
    %1042 = vmatprep.subr.mxu0 0.0
    %1043 = vmatpush1.msra.mxu0 0.0
    %1044 = vmatprep.subr.mxu0 0.0
    %1045 = vmatpush1.msra.mxu0 0.0
    %1046 = vmatprep.subr.mxu0 0.0
    %1047 = vmatpush1.msra.mxu0 0.0
    %1048 = vmatprep.subr.mxu0 0.0
    %1049 = vmatpush1.msra.mxu0 0.0
    %1050 = vmatprep.subr.mxu0 0.0
    %1051 = vmatpush1.msra.mxu0 0.0
    %1052 = vmatprep.subr.mxu0 0.0
    %1053 = vmatpush1.msra.mxu0 0.0
    %1054 = vmatprep.subr.mxu0 0.0
    %1055 = vmatpush1.msra.mxu0 0.0
    %1056 = vmatprep.subr.mxu0 0.0
    %1057 = vmatpush1.msra.mxu0 0.0
    %1058 = vmatprep.mubr.f32.mxu0 0.0
    %1059 = vmatmul.mubr.f32.gmra.mrb[0].mxu0 %v993
    %v1060 = vpop.f32.mrb[0].mxu0
    %v1061 = vadd.f32 0.0, %v1060
    %v1062 = vpop.f32.mrb[0].mxu0
    %1063 = vdwg.mxu0
    %v1064 = vadd.f32 %v605, %v1061
    %v1065 = vtanh.pop %v1064
    %1066 = vmatprep.subr.mxu0 0.0
    %1067 = vmatpush1.msra.mxu0 %v618
    %1068 = vmatprep.subr.mxu0 0.0
    %1069 = vmatpush1.msra.mxu0 %v619
    %1070 = vmatprep.subr.mxu0 0.0
    %1071 = vmatpush1.msra.mxu0 %v620
    %1072 = vmatprep.subr.mxu0 0.0
    %1073 = vmatpush1.msra.mxu0 %v621
    %1074 = vmatprep.subr.mxu0 0.0
    %1075 = vmatpush1.msra.mxu0 %v622
    %1076 = vmatprep.subr.mxu0 0.0
    %1077 = vmatpush1.msra.mxu0 %v623
    %1078 = vmatprep.subr.mxu0 0.0
    %1079 = vmatpush1.msra.mxu0 %v624
    %1080 = vmatprep.subr.mxu0 0.0
    %1081 = vmatpush1.msra.mxu0 %v625
    %1082 = vmatprep.subr.mxu0 0.0
    %1083 = vmatpush1.msra.mxu0 %v626
    %1084 = vmatprep.subr.mxu0 0.0
    %1085 = vmatpush1.msra.mxu0 %v627
    %1086 = vmatprep.subr.mxu0 0.0
    %1087 = vmatpush1.msra.mxu0 %v628
    %1088 = vmatprep.subr.mxu0 0.0
    %1089 = vmatpush1.msra.mxu0 %v629
    %1090 = vmatprep.subr.mxu0 0.0
    %1091 = vmatpush1.msra.mxu0 %v630
    %1092 = vmatprep.subr.mxu0 0.0
    %1093 = vmatpush1.msra.mxu0 %v631
    %1094 = vmatprep.subr.mxu0 0.0
    %1095 = vmatpush1.msra.mxu0 %v632
    %1096 = vmatprep.subr.mxu0 0.0
    %1097 = vmatpush1.msra.mxu0 %v633
    %1098 = vmatprep.subr.mxu0 0.0
    %1099 = vmatpush1.msra.mxu0 0.0
    %1100 = vmatprep.subr.mxu0 0.0
    %1101 = vmatpush1.msra.mxu0 0.0
    %1102 = vmatprep.subr.mxu0 0.0
    %1103 = vmatpush1.msra.mxu0 0.0
    %1104 = vmatprep.subr.mxu0 0.0
    %1105 = vmatpush1.msra.mxu0 0.0
    %1106 = vmatprep.subr.mxu0 0.0
    %1107 = vmatpush1.msra.mxu0 0.0
    %1108 = vmatprep.subr.mxu0 0.0
    %1109 = vmatpush1.msra.mxu0 0.0
    %1110 = vmatprep.subr.mxu0 0.0
    %1111 = vmatpush1.msra.mxu0 0.0
    %1112 = vmatprep.subr.mxu0 0.0
    %1113 = vmatpush1.msra.mxu0 0.0
    %1114 = vmatprep.subr.mxu0 0.0
    %1115 = vmatpush1.msra.mxu0 0.0
    %1116 = vmatprep.subr.mxu0 0.0
    %1117 = vmatpush1.msra.mxu0 0.0
    %1118 = vmatprep.subr.mxu0 0.0
    %1119 = vmatpush1.msra.mxu0 0.0
    %1120 = vmatprep.subr.mxu0 0.0
    %1121 = vmatpush1.msra.mxu0 0.0
    %1122 = vmatprep.subr.mxu0 0.0
    %1123 = vmatpush1.msra.mxu0 0.0
    %1124 = vmatprep.subr.mxu0 0.0
    %1125 = vmatpush1.msra.mxu0 0.0
    %1126 = vmatprep.subr.mxu0 0.0
    %1127 = vmatpush1.msra.mxu0 0.0
    %1128 = vmatprep.subr.mxu0 0.0
    %1129 = vmatpush1.msra.mxu0 0.0
    %1130 = vmatprep.mubr.f32.mxu0 0.0
    %1131 = vmatmul.mubr.f32.gmra.mrb[0].mxu0 %v1065
    %v1132 = vpop.f32.mrb[0].mxu0
    %v1133 = vadd.f32 0.0, %v1132
    %v1134 = vpop.f32.mrb[0].mxu0
    %1135 = vdwg.mxu0
    %v1136 = vadd.f32 %v610, %v1133
    %v1137 = vtanh.pop %v1136
    %1138 = vmatprep.subr.mxu0 0.0
    %1139 = vmatpush1.msra.mxu0 %v618
    %1140 = vmatprep.subr.mxu0 0.0
    %1141 = vmatpush1.msra.mxu0 %v619
    %1142 = vmatprep.subr.mxu0 0.0
    %1143 = vmatpush1.msra.mxu0 %v620
    %1144 = vmatprep.subr.mxu0 0.0
    %1145 = vmatpush1.msra.mxu0 %v621
    %1146 = vmatprep.subr.mxu0 0.0
    %1147 = vmatpush1.msra.mxu0 %v622
    %1148 = vmatprep.subr.mxu0 0.0
    %1149 = vmatpush1.msra.mxu0 %v623
    %1150 = vmatprep.subr.mxu0 0.0
    %1151 = vmatpush1.msra.mxu0 %v624
    %1152 = vmatprep.subr.mxu0 0.0
    %1153 = vmatpush1.msra.mxu0 %v625
    %1154 = vmatprep.subr.mxu0 0.0
    %1155 = vmatpush1.msra.mxu0 %v626
    %1156 = vmatprep.subr.mxu0 0.0
    %1157 = vmatpush1.msra.mxu0 %v627
    %1158 = vmatprep.subr.mxu0 0.0
    %1159 = vmatpush1.msra.mxu0 %v628
    %1160 = vmatprep.subr.mxu0 0.0
    %1161 = vmatpush1.msra.mxu0 %v629
    %1162 = vmatprep.subr.mxu0 0.0
    %1163 = vmatpush1.msra.mxu0 %v630
    %1164 = vmatprep.subr.mxu0 0.0
    %1165 = vmatpush1.msra.mxu0 %v631
    %1166 = vmatprep.subr.mxu0 0.0
    %1167 = vmatpush1.msra.mxu0 %v632
    %1168 = vmatprep.subr.mxu0 0.0
    %1169 = vmatpush1.msra.mxu0 %v633
    %1170 = vmatprep.subr.mxu0 0.0
    %1171 = vmatpush1.msra.mxu0 0.0
    %1172 = vmatprep.subr.mxu0 0.0
    %1173 = vmatpush1.msra.mxu0 0.0
    %1174 = vmatprep.subr.mxu0 0.0
    %1175 = vmatpush1.msra.mxu0 0.0
    %1176 = vmatprep.subr.mxu0 0.0
    %1177 = vmatpush1.msra.mxu0 0.0
    %1178 = vmatprep.subr.mxu0 0.0
    %1179 = vmatpush1.msra.mxu0 0.0
    %1180 = vmatprep.subr.mxu0 0.0
    %1181 = vmatpush1.msra.mxu0 0.0
    %1182 = vmatprep.subr.mxu0 0.0
    %1183 = vmatpush1.msra.mxu0 0.0
    %1184 = vmatprep.subr.mxu0 0.0
    %1185 = vmatpush1.msra.mxu0 0.0
    %1186 = vmatprep.subr.mxu0 0.0
    %1187 = vmatpush1.msra.mxu0 0.0
    %1188 = vmatprep.subr.mxu0 0.0
    %1189 = vmatpush1.msra.mxu0 0.0
    %1190 = vmatprep.subr.mxu0 0.0
    %1191 = vmatpush1.msra.mxu0 0.0
    %1192 = vmatprep.subr.mxu0 0.0
    %1193 = vmatpush1.msra.mxu0 0.0
    %1194 = vmatprep.subr.mxu0 0.0
    %1195 = vmatpush1.msra.mxu0 0.0
    %1196 = vmatprep.subr.mxu0 0.0
    %1197 = vmatpush1.msra.mxu0 0.0
    %1198 = vmatprep.subr.mxu0 0.0
    %1199 = vmatpush1.msra.mxu0 0.0
    %1200 = vmatprep.subr.mxu0 0.0
    %1201 = vmatpush1.msra.mxu0 0.0
    %1202 = vmatprep.mubr.f32.mxu0 0.0
    %1203 = vmatmul.mubr.f32.gmra.mrb[0].mxu0 %v1137
    %v1204 = vpop.f32.mrb[0].mxu0
    %v1205 = vadd.f32 0.0, %v1204
    %v1206 = vpop.f32.mrb[0].mxu0
    %1207 = vdwg.mxu0
    %v1208 = vadd.f32 %v615, %v1205
    %v1209 = vtanh.pop %v1208
    %v1210 = vld [vmem:[#allocation10] sm:$0xff]
    %v1211 = vld [vmem:[#allocation10 + $0x8] sm:$0xff]
    %v1212 = vld [vmem:[#allocation10 + $0x10] sm:$0xff]
    %v1213 = vld [vmem:[#allocation10 + $0x18] sm:$0xff]
    %v1214 = vld [vmem:[#allocation10 + $0x20] sm:$0xff]
    %v1215 = vld [vmem:[#allocation10 + $0x28] sm:$0xff]
    %v1216 = vld [vmem:[#allocation10 + $0x30] sm:$0xff]
    %v1217 = vld [vmem:[#allocation10 + $0x38] sm:$0xff]
    %v1218 = vld [vmem:[#allocation10 + $0x40] sm:$0xff]
    %v1219 = vld [vmem:[#allocation10 + $0x48] sm:$0xff]
    %v1220 = vld [vmem:[#allocation10 + $0x50] sm:$0xff]
    %v1221 = vld [vmem:[#allocation10 + $0x58] sm:$0xff]
    %v1222 = vld [vmem:[#allocation10 + $0x60] sm:$0xff]
    %v1223 = vld [vmem:[#allocation10 + $0x68] sm:$0xff]
    %v1224 = vld [vmem:[#allocation10 + $0x70] sm:$0xff]
    %v1225 = vld [vmem:[#allocation10 + $0x78] sm:$0xff]
    %v1226 = vld [vmem:[%s6] sm:$0x1]
    %v1228 = vlaneseq
    %v1229 = vshrl.u32 %v1228, 7
    %v1230 = vsub.s32 0, %v1229
    %v1231 = vrot.slane %v1226, %v1230
    %1233 = vmatprep.subr.mxu0 0.0
    %1234 = vmatpush1.msra.mxu0 %v1210
    %1235 = vmatprep.subr.mxu0 0.0
    %1236 = vmatpush1.msra.mxu0 %v1211
    %1237 = vmatprep.subr.mxu0 0.0
    %1238 = vmatpush1.msra.mxu0 %v1212
    %1239 = vmatprep.subr.mxu0 0.0
    %1240 = vmatpush1.msra.mxu0 %v1213
    %1241 = vmatprep.subr.mxu0 0.0
    %1242 = vmatpush1.msra.mxu0 %v1214
    %1243 = vmatprep.subr.mxu0 0.0
    %1244 = vmatpush1.msra.mxu0 %v1215
    %1245 = vmatprep.subr.mxu0 0.0
    %1246 = vmatpush1.msra.mxu0 %v1216
    %1247 = vmatprep.subr.mxu0 0.0
    %1248 = vmatpush1.msra.mxu0 %v1217
    %1249 = vmatprep.subr.mxu0 0.0
    %1250 = vmatpush1.msra.mxu0 %v1218
    %1251 = vmatprep.subr.mxu0 0.0
    %1252 = vmatpush1.msra.mxu0 %v1219
    %1253 = vmatprep.subr.mxu0 0.0
    %1254 = vmatpush1.msra.mxu0 %v1220
    %1255 = vmatprep.subr.mxu0 0.0
    %1256 = vmatpush1.msra.mxu0 %v1221
    %1257 = vmatprep.subr.mxu0 0.0
    %1258 = vmatpush1.msra.mxu0 %v1222
    %1259 = vmatprep.subr.mxu0 0.0
    %1260 = vmatpush1.msra.mxu0 %v1223
    %1261 = vmatprep.subr.mxu0 0.0
    %1262 = vmatpush1.msra.mxu0 %v1224
    %1263 = vmatprep.subr.mxu0 0.0
    %1264 = vmatpush1.msra.mxu0 %v1225
    %1265 = vmatprep.subr.mxu0 0.0
    %1266 = vmatpush1.msra.mxu0 0.0
    %1267 = vmatprep.subr.mxu0 0.0
    %1268 = vmatpush1.msra.mxu0 0.0
    %1269 = vmatprep.subr.mxu0 0.0
    %1270 = vmatpush1.msra.mxu0 0.0
    %1271 = vmatprep.subr.mxu0 0.0
    %1272 = vmatpush1.msra.mxu0 0.0
    %1273 = vmatprep.subr.mxu0 0.0
    %1274 = vmatpush1.msra.mxu0 0.0
    %1275 = vmatprep.subr.mxu0 0.0
    %1276 = vmatpush1.msra.mxu0 0.0
    %1277 = vmatprep.subr.mxu0 0.0
    %1278 = vmatpush1.msra.mxu0 0.0
    %1279 = vmatprep.subr.mxu0 0.0
    %1280 = vmatpush1.msra.mxu0 0.0
    %1281 = vmatprep.subr.mxu0 0.0
    %1282 = vmatpush1.msra.mxu0 0.0
    %1283 = vmatprep.subr.mxu0 0.0
    %1284 = vmatpush1.msra.mxu0 0.0
    %1285 = vmatprep.subr.mxu0 0.0
    %1286 = vmatpush1.msra.mxu0 0.0
    %1287 = vmatprep.subr.mxu0 0.0
    %1288 = vmatpush1.msra.mxu0 0.0
    %1289 = vmatprep.subr.mxu0 0.0
    %1290 = vmatpush1.msra.mxu0 0.0
    %1291 = vmatprep.subr.mxu0 0.0
    %1292 = vmatpush1.msra.mxu0 0.0
    %1293 = vmatprep.subr.mxu0 0.0
    %1294 = vmatpush1.msra.mxu0 0.0
    %1295 = vmatprep.subr.mxu0 0.0
    %1296 = vmatpush1.msra.mxu0 0.0
    %1297 = vmatprep.mubr.f32.mxu0 0.0
    %1298 = vmatmul.mubr.f32.gmra.mrb[0].mxu0 %v1209
    %v1299 = vpop.f32.mrb[0].mxu0
    %v1300 = vadd.f32 %v1231, %v1299
    %v1301 = vpop.f32.mrb[0].mxu0
    %1302 = vdwg.mxu0
    %1303 = vst [vmem:[%s7] sm:$0xff] %v1300
    // Predicated region
    $region50: #{forward.1} parent=1 // pred_check
      _
    $region51: #{forward.1} parent=1 // pred_check_branch
      %1305 = sbr.rel (0) target = $region53
    $region52: #{forward.1} parent=1 // pred_region
      _
    $region53: #{forward.1} parent=1 // pred_fallthru
      _
    // Predicated region
    $region54: #{forward.1} parent=1 // pred_check
      _
    $region55: #{forward.1} parent=1 // pred_check_branch
      %1307 = sbr.rel (0) target = $region57
    $region56: #{forward.1} parent=1 // pred_region
      _
    $region57: #{forward.1} parent=1 // pred_fallthru
      _
    %1308 = vsyncpa [#allocation4], 1
    %1309 = vsyncpa [#allocation8], 1
    %1310 = vsyncpa [#allocation11], 1
    %1311 = vsyncpa [#allocation5], 1

</llo_original>
